<compile_context>
chip_gen: v6e
topology: v6e:2x2x1
jax: 0.10.0
libtpu: 0.0.40
codegen_flags: <defaults>
</compile_context>

<pallas_src>
import functools
from math import pi as PI

import jax
import jax.numpy as jnp
from jax.experimental import pallas as pl
from jax.experimental.pallas import tpu as pltpu


def _shifted_softplus(v):
    return jax.nn.softplus(v) - jnp.log(2.0).astype(v.dtype)


def _round_up(v, m):
    return ((v + m - 1) // m) * m


def interaction_block_kernel(
    # scalar prefetch (SMEM)
    src_ref, dst_ref,
    # tensor inputs (VMEM)
    x_ref, elen_ref, eattr_ref,
    w_nn1_ref, b_nn1_ref, w_nn2_ref, b_nn2_ref,
    w_lin1_ref, w_lin2_ref, b_lin2_ref, w_lin_ref, b_lin_ref,
    # output
    out_ref,
    # scratch
    xf_sc, acc_sc, w_sc,
    *, cutoff, smooth, edge_block, mxu_dtype):
    eb = pl.program_id(0)
    n_eb = pl.num_programs(0)

    # ---- init (first edge block): lin1 (no bias) + zero the accumulator ----
    @pl.when(eb == 0)
    def _init():
        xf_sc[...] = jnp.dot(x_ref[...].astype(mxu_dtype),
                             w_lin1_ref[...].astype(mxu_dtype),
                             preferred_element_type=jnp.float32)
        acc_sc[...] = jnp.zeros_like(acc_sc)

    # ---- CFConv.nn on this edge block: Linear -> ShiftedSoftplus -> Linear ----
    h = jnp.dot(eattr_ref[...].astype(mxu_dtype), w_nn1_ref[...].astype(mxu_dtype),
                preferred_element_type=jnp.float32) + b_nn1_ref[...]
    h = _shifted_softplus(h)
    W = jnp.dot(h.astype(mxu_dtype), w_nn2_ref[...].astype(mxu_dtype),
                preferred_element_type=jnp.float32) + b_nn2_ref[...]      # [Eb, Fp] f32

    # ---- cutoff envelope (f32 VPU math; padded edges have elen > cutoff -> C=0) ----
    elen = elen_ref[...]                                                  # [Eb, 1] f32
    if smooth:
        C = 0.5 * (jnp.cos(elen * (PI / cutoff)) + 1.0)
        C = C * ((elen <= cutoff) & (elen >= 0.0)).astype(jnp.float32)
    else:
        C = (elen <= cutoff).astype(jnp.float32)
    w_sc[...] = W * C                                                     # [Eb, Fp]

    # ---- propagate(aggr='add'): per-edge gather + message + scatter-add ----
    base = eb * edge_block

    def _edge_body(e, carry):
        idx = base + e
        s = src_ref[idx]
        d = dst_ref[idx]
        msg = xf_sc[pl.ds(s, 1), :] * w_sc[pl.ds(e, 1), :]                # [1, Fp] f32
        acc_sc[pl.ds(d, 1), :] = acc_sc[pl.ds(d, 1), :] + msg
        return carry

    jax.lax.fori_loop(0, edge_block, _edge_body, 0,
                      unroll=(edge_block <= 32))

    # ---- finalize (last edge block): lin2 -> act -> lin ----
    @pl.when(eb == n_eb - 1)
    def _finalize():
        y = jnp.dot(acc_sc[...].astype(mxu_dtype), w_lin2_ref[...].astype(mxu_dtype),
                    preferred_element_type=jnp.float32) + b_lin2_ref[...]
        y = _shifted_softplus(y)
        out = jnp.dot(y.astype(mxu_dtype), w_lin_ref[...].astype(mxu_dtype),
                      preferred_element_type=jnp.float32) + b_lin_ref[...]
        out_ref[...] = out.astype(out_ref.dtype)


def interaction_block(x, src, dst, edge_length, edge_attr, params, *,
                      cutoff, smooth=False, mxu_dtype=jnp.bfloat16, edge_block=256):
    N, H = x.shape
    E, G = edge_attr.shape
    F = params["w_lin1"].shape[1]

    LANE, SUB = 128, 8
    Np = _round_up(N, SUB)
    Hp = _round_up(H, LANE)
    Fp = _round_up(F, LANE)
    Gp = _round_up(G, LANE)
    e_blk = min(_round_up(E, SUB), _round_up(edge_block, SUB))
    Ep = _round_up(E, e_blk)
    n_eb = Ep // e_blk

    def pad2(a, r, c, fill=0.0):
        return jnp.pad(a, ((0, r - a.shape[0]), (0, c - a.shape[1])),
                       constant_values=fill)

    # Activations / edges (zero pad channels; padded edges get elen > cutoff so C=0).
    x_p = pad2(x, Np, Hp).astype(mxu_dtype)
    eattr_p = pad2(edge_attr, Ep, Gp).astype(mxu_dtype)
    elen_p = pad2(edge_length.reshape(-1, 1).astype(jnp.float32), Ep, 1,
                  fill=float(cutoff) + 1.0)
    src_p = jnp.pad(src.reshape(-1).astype(jnp.int32), (0, Ep - E))
    dst_p = jnp.pad(dst.reshape(-1).astype(jnp.int32), (0, Ep - E))

    # Weights [in, out] (transpose of torch Linear.weight); biases stay f32.
    w_nn1 = pad2(params["w_nn1"], Gp, Fp).astype(mxu_dtype)
    b_nn1 = pad2(params["b_nn1"].reshape(1, -1), 1, Fp).astype(jnp.float32)
    w_nn2 = pad2(params["w_nn2"], Fp, Fp).astype(mxu_dtype)
    b_nn2 = pad2(params["b_nn2"].reshape(1, -1), 1, Fp).astype(jnp.float32)
    w_lin1 = pad2(params["w_lin1"], Hp, Fp).astype(mxu_dtype)
    w_lin2 = pad2(params["w_lin2"], Fp, Hp).astype(mxu_dtype)
    b_lin2 = pad2(params["b_lin2"].reshape(1, -1), 1, Hp).astype(jnp.float32)
    w_lin = pad2(params["w_lin"], Hp, Hp).astype(mxu_dtype)
    b_lin = pad2(params["b_lin"].reshape(1, -1), 1, Hp).astype(jnp.float32)

    kernel = functools.partial(interaction_block_kernel,
                               cutoff=float(cutoff), smooth=bool(smooth),
                               edge_block=e_blk, mxu_dtype=mxu_dtype)

    resident = lambda i, *_: (0, 0)      # same block every step (stays in VMEM)
    edge_tiled = lambda i, *_: (i, 0)    # tiled along the edge grid axis

    in_specs = [
        pl.BlockSpec((Np, Hp), resident),       # x
        pl.BlockSpec((e_blk, 1), edge_tiled),   # edge_length
        pl.BlockSpec((e_blk, Gp), edge_tiled),  # edge_attr
        pl.BlockSpec((Gp, Fp), resident),       # w_nn1
        pl.BlockSpec((1, Fp), resident),        # b_nn1
        pl.BlockSpec((Fp, Fp), resident),       # w_nn2
        pl.BlockSpec((1, Fp), resident),        # b_nn2
        pl.BlockSpec((Hp, Fp), resident),       # w_lin1
        pl.BlockSpec((Fp, Hp), resident),       # w_lin2
        pl.BlockSpec((1, Hp), resident),        # b_lin2
        pl.BlockSpec((Hp, Hp), resident),       # w_lin
        pl.BlockSpec((1, Hp), resident),        # b_lin
    ]
    out_spec = pl.BlockSpec((Np, Hp), resident)

    scratch_shapes = [
        pltpu.VMEM((Np, Fp), jnp.float32),      # xf = lin1(x)
        pltpu.VMEM((Np, Fp), jnp.float32),      # scatter-add accumulator
        pltpu.VMEM((e_blk, Fp), jnp.float32),   # per-block edge filter W*C
    ]

    # VMEM budget (with headroom for double-buffered edge tiles), clamped to 64 MiB.
    isz = jnp.dtype(mxu_dtype).itemsize
    est_bytes = (isz * (Np * Hp + 2 * e_blk * Gp
                        + Gp * Fp + Fp * Fp + Hp * Fp + Fp * Hp + Hp * Hp)
                 + 4 * (2 * e_blk + 2 * Fp + 3 * Hp)
                 + 4 * (2 * Np * Fp + e_blk * Fp)
                 + 4 * Np * Hp)
    vmem_limit = int(min(max(2 * est_bytes, 16 * 2 ** 20), 64 * 2 ** 20))

    cost = pl.CostEstimate(
        flops=int(2 * (Ep * Gp * Fp + Ep * Fp * Fp + Np * Hp * Fp
                       + Np * Fp * Hp + Np * Hp * Hp) + 3 * Ep * Fp),
        transcendentals=int(Ep * Fp + Np * Hp),
        bytes_accessed=int(isz * (Np * Hp + Ep * Gp + Gp * Fp + Fp * Fp
                                  + Hp * Fp + Fp * Hp + Hp * Hp)
                           + 4 * (3 * Ep + 2 * Fp + 3 * Hp + Np * Hp)),
    )

    out_p = pl.pallas_call(
        kernel,
        out_shape=jax.ShapeDtypeStruct((Np, Hp), jnp.float32),
        grid_spec=pltpu.PrefetchScalarGridSpec(
            num_scalar_prefetch=2,
            grid=(n_eb,),
            in_specs=in_specs,
            out_specs=out_spec,
            scratch_shapes=scratch_shapes),
        compiler_params=pltpu.CompilerParams(
            dimension_semantics=("arbitrary",),
            vmem_limit_bytes=vmem_limit),
        cost_estimate=cost,
    )(src_p, dst_p, x_p, elen_p, eattr_p,
      w_nn1, b_nn1, w_nn2, b_nn2, w_lin1, w_lin2, b_lin2, w_lin, b_lin)

    return out_p[:N, :H]


def _reference(x, src, dst, edge_length, edge_attr, params, *, cutoff, smooth):
    # Pure-JAX f32 reference matching the PyTorch semantics.
    h = edge_attr @ params["w_nn1"] + params["b_nn1"]
    h = _shifted_softplus(h)
    W = h @ params["w_nn2"] + params["b_nn2"]
    el = edge_length.reshape(-1)
    if smooth:
        C = 0.5 * (jnp.cos(el * PI / cutoff) + 1.0)
        C = C * (el <= cutoff) * (el >= 0.0)
    else:
        C = (el <= cutoff).astype(jnp.float32)
    W = W * C.reshape(-1, 1)
    xf = x @ params["w_lin1"]
    msg = xf[src] * W
    agg = jnp.zeros_like(xf).at[dst].add(msg)
    y = agg @ params["w_lin2"] + params["b_lin2"]
    y = _shifted_softplus(y)
    return y @ params["w_lin"] + params["b_lin"]


if __name__ == "__main__":
    # Small shapes implied by the module:
    #   hidden_channels H = 32, num_filters F = 32, num_gaussians G = 16
    #   N = 10 nodes, E = 20 edges (exercises node/edge padding and a 3-step
    #   edge grid with edge_block=8), cutoff = 10.0, smooth = False
    N, H, F, G, E = 10, 32, 32, 16, 20
    cutoff, smooth = 10.0, False

    key = jax.random.PRNGKey(0)
    ks = jax.random.split(key, 12)

    x = jax.random.normal(ks[0], (N, H), dtype=jnp.float32)
    src = jax.random.randint(ks[1], (E,), 0, N, dtype=jnp.int32)   # edge_index[0] (source j)
    dst = jax.random.randint(ks[2], (E,), 0, N, dtype=jnp.int32)   # edge_index[1] (target i)
    edge_length = jax.random.uniform(ks[3], (E, 1), minval=0.0, maxval=12.0, dtype=jnp.float32)
    edge_attr = jax.random.normal(ks[4], (E, G), dtype=jnp.float32)

    def init_w(k, fan_in, fan_out):
        bound = 1.0 / jnp.sqrt(fan_in)
        return jax.random.uniform(k, (fan_in, fan_out), minval=-bound, maxval=bound,
                                  dtype=jnp.float32)

    params = {
        # CFConv.nn: Linear(G, F) -> ShiftedSoftplus() -> Linear(F, F)
        "w_nn1": init_w(ks[5], G, F),
        "b_nn1": jnp.zeros((1, F), jnp.float32) + 0.01,
        "w_nn2": init_w(ks[6], F, F),
        "b_nn2": jnp.zeros((1, F), jnp.float32) - 0.02,
        # CFConv.lin1 (no bias), CFConv.lin2 (bias)
        "w_lin1": init_w(ks[7], H, F),
        "w_lin2": init_w(ks[8], F, H),
        "b_lin2": jnp.zeros((1, H), jnp.float32) + 0.03,
        # InteractionBlock.lin
        "w_lin": init_w(ks[9], H, H),
        "b_lin": jnp.zeros((1, H), jnp.float32) - 0.04,
    }

    ref = _reference(x, src, dst, edge_length, edge_attr, params,
                     cutoff=cutoff, smooth=smooth)

    # 1) f32 MXU operands: tight logic check against the f32 reference.
    out_f32 = interaction_block(x, src, dst, edge_length, edge_attr, params,
                                cutoff=cutoff, smooth=smooth,
                                mxu_dtype=jnp.float32, edge_block=8)
    out_f32 = jax.block_until_ready(out_f32)
    assert out_f32.shape == (N, H)
    assert jnp.allclose(out_f32, ref, atol=2e-4, rtol=2e-4), "f32 mismatch vs reference"

    # 2) bf16 MXU operands / f32 accumulate (recommended perf path on v6e/v7x):
    #    looser tolerance to absorb bf16 operand rounding.
    out_bf16 = interaction_block(x, src, dst, edge_length, edge_attr, params,
                                 cutoff=cutoff, smooth=smooth,
                                 mxu_dtype=jnp.bfloat16, edge_block=8)
    out_bf16 = jax.block_until_ready(out_bf16)
    assert out_bf16.shape == (N, H)
    assert jnp.allclose(out_bf16, ref, atol=3e-2, rtol=3e-2), "bf16 mismatch vs reference"

    print("KERNEL_OK")
</pallas_src>

<mosaic_0001>
module attributes {stable_mosaic.version = 11 : i64} {
  func.func @interaction_block_kernel(%arg0: i32, %arg1: memref<24xi32, #tpu.memory_space<smem>>, %arg2: memref<24xi32, #tpu.memory_space<smem>>, %arg3: memref<16x128xf32, #tpu.memory_space<vmem>>, %arg4: memref<8x1xf32, #tpu.memory_space<vmem>>, %arg5: memref<8x128xf32, #tpu.memory_space<vmem>>, %arg6: memref<128x128xf32, #tpu.memory_space<vmem>>, %arg7: memref<1x128xf32, #tpu.memory_space<vmem>>, %arg8: memref<128x128xf32, #tpu.memory_space<vmem>>, %arg9: memref<1x128xf32, #tpu.memory_space<vmem>>, %arg10: memref<128x128xf32, #tpu.memory_space<vmem>>, %arg11: memref<128x128xf32, #tpu.memory_space<vmem>>, %arg12: memref<1x128xf32, #tpu.memory_space<vmem>>, %arg13: memref<128x128xf32, #tpu.memory_space<vmem>>, %arg14: memref<1x128xf32, #tpu.memory_space<vmem>>, %arg15: memref<16x128xf32, #tpu.memory_space<vmem>>, %arg16: memref<16x128xf32, #tpu.memory_space<vmem>>, %arg17: memref<16x128xf32, #tpu.memory_space<vmem>>, %arg18: memref<8x128xf32, #tpu.memory_space<vmem>>) attributes {dimension_semantics = [#tpu.dimension_semantics<arbitrary>], iteration_bounds = array<i64: 3>, scalar_prefetch = 2 : i64, scratch_operands = 3 : i64, tpu.core_type = #tpu.core_type<tc>, window_params = [{pipeline_mode = #tpu.pipeline_mode<synchronous>, transform_indices = @transform_0, window_bounds = array<i64: 16, 128>}, {transform_indices = @transform_1, window_bounds = array<i64: 8, 1>}, {transform_indices = @transform_2, window_bounds = array<i64: 8, 128>}, {pipeline_mode = #tpu.pipeline_mode<synchronous>, transform_indices = @transform_3, window_bounds = array<i64: 128, 128>}, {pipeline_mode = #tpu.pipeline_mode<synchronous>, transform_indices = @transform_4, window_bounds = array<i64: 1, 128>}, {pipeline_mode = #tpu.pipeline_mode<synchronous>, transform_indices = @transform_5, window_bounds = array<i64: 128, 128>}, {pipeline_mode = #tpu.pipeline_mode<synchronous>, transform_indices = @transform_6, window_bounds = array<i64: 1, 128>}, {pipeline_mode = #tpu.pipeline_mode<synchronous>, transform_indices = @transform_7, window_bounds = array<i64: 128, 128>}, {pipeline_mode = #tpu.pipeline_mode<synchronous>, transform_indices = @transform_8, window_bounds = array<i64: 128, 128>}, {pipeline_mode = #tpu.pipeline_mode<synchronous>, transform_indices = @transform_9, window_bounds = array<i64: 1, 128>}, {pipeline_mode = #tpu.pipeline_mode<synchronous>, transform_indices = @transform_10, window_bounds = array<i64: 128, 128>}, {pipeline_mode = #tpu.pipeline_mode<synchronous>, transform_indices = @transform_11, window_bounds = array<i64: 1, 128>}, {pipeline_mode = #tpu.pipeline_mode<synchronous>, transform_indices = @transform_12, window_bounds = array<i64: 16, 128>}]} {
    %c0_i32 = arith.constant 0 : i32
    %0 = arith.cmpi eq, %arg0, %c0_i32 : i32
    %1 = arith.extui %0 : i1 to i32
    %c0_i32_0 = arith.constant 0 : i32
    %2 = arith.cmpi ne, %1, %c0_i32_0 : i32
    scf.if %2 {
      %c0_55 = arith.constant 0 : index
      %c0_56 = arith.constant 0 : index
      %163 = vector.load %arg3[%c0_55, %c0_56] : memref<16x128xf32, #tpu.memory_space<vmem>>, vector<16x128xf32>
      %c0_57 = arith.constant 0 : index
      %c0_58 = arith.constant 0 : index
      %164 = vector.load %arg10[%c0_57, %c0_58] : memref<128x128xf32, #tpu.memory_space<vmem>>, vector<128x128xf32>
      %cst_59 = arith.constant dense<0.000000e+00> : vector<16x128xf32>
      %165 = tpu.matmul %163, %164, %cst_59 {dimension_numbers = #tpu.dot_dimension_numbers<[1], [0], [0], [1], [0, 0, 1, 1], [], []>} : vector<16x128xf32>, vector<128x128xf32>, vector<16x128xf32> -> vector<16x128xf32>
      %c0_60 = arith.constant 0 : index
      %c0_61 = arith.constant 0 : index
      %166 = vector.load %arg16[%c0_60, %c0_61] : memref<16x128xf32, #tpu.memory_space<vmem>>, vector<16x128xf32>
      tpu.vector_store %arg16[%c0_60, %c0_61], %165 {strides = array<i32>} : memref<16x128xf32, #tpu.memory_space<vmem>>, vector<16x128xf32>,
      %cst_62 = arith.constant 0.000000e+00 : f32
      %167 = vector.broadcast %cst_62 : f32 to vector<16x128xf32>
      %c0_63 = arith.constant 0 : index
      %c0_64 = arith.constant 0 : index
      %168 = vector.load %arg17[%c0_63, %c0_64] : memref<16x128xf32, #tpu.memory_space<vmem>>, vector<16x128xf32>
      tpu.vector_store %arg17[%c0_63, %c0_64], %167 {strides = array<i32>} : memref<16x128xf32, #tpu.memory_space<vmem>>, vector<16x128xf32>,
    } else {
    }
    %c0 = arith.constant 0 : index
    %c0_1 = arith.constant 0 : index
    %3 = vector.load %arg5[%c0, %c0_1] : memref<8x128xf32, #tpu.memory_space<vmem>>, vector<8x128xf32>
    %c0_2 = arith.constant 0 : index
    %c0_3 = arith.constant 0 : index
    %4 = vector.load %arg6[%c0_2, %c0_3] : memref<128x128xf32, #tpu.memory_space<vmem>>, vector<128x128xf32>
    %cst = arith.constant dense<0.000000e+00> : vector<8x128xf32>
    %5 = tpu.matmul %3, %4, %cst {dimension_numbers = #tpu.dot_dimension_numbers<[1], [0], [0], [1], [0, 0, 1, 1], [], []>} : vector<8x128xf32>, vector<128x128xf32>, vector<8x128xf32> -> vector<8x128xf32>
    %c0_4 = arith.constant 0 : index
    %c0_5 = arith.constant 0 : index
    %6 = vector.load %arg7[%c0_4, %c0_5] : memref<1x128xf32, #tpu.memory_space<vmem>>, vector<1x128xf32>
    %7 = vector.broadcast %6 : vector<1x128xf32> to vector<8x128xf32>
    %8 = arith.addf %5, %7 : vector<8x128xf32>
    %cst_6 = arith.constant 0.000000e+00 : f32
    %9 = vector.broadcast %cst_6 : f32 to vector<8x128xf32>
    %10 = arith.maximumf %8, %9 : vector<8x128xf32>
    %11 = vector.broadcast %cst_6 : f32 to vector<8x128xf32>
    %12 = arith.subf %8, %11 : vector<8x128xf32>
    %13 = arith.cmpf one, %12, %12 : vector<8x128xf32>
    %14 = vector.broadcast %cst_6 : f32 to vector<8x128xf32>
    %15 = arith.addf %8, %14 : vector<8x128xf32>
    %16 = math.absf %12 : vector<8x128xf32>
    %cst_7 = arith.constant 0.000000e+00 : f32
    %17 = vector.broadcast %cst_7 : f32 to vector<8x128xf32>
    %18 = arith.subf %17, %16 : vector<8x128xf32>
    %19 = math.exp %18 : vector<8x128xf32>
    %20 = math.log1p %19 : vector<8x128xf32>
    %21 = arith.addf %10, %20 : vector<8x128xf32>
    %22 = arith.select %13, %15, %21 : vector<8x128xi1>, vector<8x128xf32>
    %cst_8 = arith.constant 2.000000e+00 : f32
    %23 = math.log %cst_8 : f32
    %24 = vector.broadcast %23 : f32 to vector<8x128xf32>
    %25 = arith.subf %22, %24 : vector<8x128xf32>
    %c0_9 = arith.constant 0 : index
    %c0_10 = arith.constant 0 : index
    %26 = vector.load %arg8[%c0_9, %c0_10] : memref<128x128xf32, #tpu.memory_space<vmem>>, vector<128x128xf32>
    %cst_11 = arith.constant dense<0.000000e+00> : vector<8x128xf32>
    %27 = tpu.matmul %25, %26, %cst_11 {dimension_numbers = #tpu.dot_dimension_numbers<[1], [0], [0], [1], [0, 0, 1, 1], [], []>} : vector<8x128xf32>, vector<128x128xf32>, vector<8x128xf32> -> vector<8x128xf32>
    %c0_12 = arith.constant 0 : index
    %c0_13 = arith.constant 0 : index
    %28 = vector.load %arg9[%c0_12, %c0_13] : memref<1x128xf32, #tpu.memory_space<vmem>>, vector<1x128xf32>
    %29 = vector.broadcast %28 : vector<1x128xf32> to vector<8x128xf32>
    %30 = arith.addf %27, %29 : vector<8x128xf32>
    %c0_14 = arith.constant 0 : index
    %c0_15 = arith.constant 0 : index
    %31 = vector.load %arg4[%c0_14, %c0_15] : memref<8x1xf32, #tpu.memory_space<vmem>>, vector<8x1xf32>
    %cst_16 = arith.constant 1.000000e+01 : f32
    %32 = vector.broadcast %cst_16 : f32 to vector<8x1xf32>
    %33 = arith.cmpf ole, %31, %32 : vector<8x1xf32>
    %34 = arith.extui %33 : vector<8x1xi1> to vector<8x1xi32>
    %35 = arith.sitofp %34 : vector<8x1xi32> to vector<8x1xf32>
    %36 = vector.broadcast %35 : vector<8x1xf32> to vector<8x128xf32>
    %37 = arith.mulf %30, %36 : vector<8x128xf32>
    %c0_17 = arith.constant 0 : index
    %c0_18 = arith.constant 0 : index
    %38 = vector.load %arg18[%c0_17, %c0_18] : memref<8x128xf32, #tpu.memory_space<vmem>>, vector<8x128xf32>
    tpu.vector_store %arg18[%c0_17, %c0_18], %37 {strides = array<i32>} : memref<8x128xf32, #tpu.memory_space<vmem>>, vector<8x128xf32>,
    %c8_i32 = arith.constant 8 : i32
    %39 = arith.muli %arg0, %c8_i32 : i32
    %c0_i32_19 = arith.constant 0 : i32
    %40 = arith.addi %39, %c0_i32_19 : i32
    %41 = arith.index_cast %40 : i32 to index
    %42 = memref.load %arg1[%41] : memref<24xi32, #tpu.memory_space<smem>>
    %43 = arith.index_cast %40 : i32 to index
    %44 = memref.load %arg2[%43] : memref<24xi32, #tpu.memory_space<smem>>
    %45 = arith.index_cast %42 : i32 to index
    %c0_20 = arith.constant 0 : index
    %46 = vector.load %arg16[%45, %c0_20] : memref<16x128xf32, #tpu.memory_space<vmem>>, vector<1x128xf32>
    %47 = arith.index_cast %c0_i32_19 : i32 to index
    %c0_21 = arith.constant 0 : index
    %48 = vector.load %arg18[%47, %c0_21] : memref<8x128xf32, #tpu.memory_space<vmem>>, vector<1x128xf32>
    %49 = arith.mulf %46, %48 : vector<1x128xf32>
    %50 = arith.index_cast %44 : i32 to index
    %c0_22 = arith.constant 0 : index
    %51 = vector.load %arg17[%50, %c0_22] : memref<16x128xf32, #tpu.memory_space<vmem>>, vector<1x128xf32>
    %52 = arith.addf %51, %49 : vector<1x128xf32>
    %53 = arith.index_cast %44 : i32 to index
    %c0_23 = arith.constant 0 : index
    %54 = vector.load %arg17[%53, %c0_23] : memref<16x128xf32, #tpu.memory_space<vmem>>, vector<1x128xf32>
    tpu.vector_store %arg17[%53, %c0_23], %52 {strides = array<i32>} : memref<16x128xf32, #tpu.memory_space<vmem>>, vector<1x128xf32>,
    %c1_i32 = arith.constant 1 : i32
    %55 = arith.addi %39, %c1_i32 : i32
    %56 = arith.index_cast %55 : i32 to index
    %57 = memref.load %arg1[%56] : memref<24xi32, #tpu.memory_space<smem>>
    %58 = arith.index_cast %55 : i32 to index
    %59 = memref.load %arg2[%58] : memref<24xi32, #tpu.memory_space<smem>>
    %60 = arith.index_cast %57 : i32 to index
    %c0_24 = arith.constant 0 : index
    %61 = vector.load %arg16[%60, %c0_24] : memref<16x128xf32, #tpu.memory_space<vmem>>, vector<1x128xf32>
    %62 = arith.index_cast %c1_i32 : i32 to index
    %c0_25 = arith.constant 0 : index
    %63 = vector.load %arg18[%62, %c0_25] : memref<8x128xf32, #tpu.memory_space<vmem>>, vector<1x128xf32>
    %64 = arith.mulf %61, %63 : vector<1x128xf32>
    %65 = arith.index_cast %59 : i32 to index
    %c0_26 = arith.constant 0 : index
    %66 = vector.load %arg17[%65, %c0_26] : memref<16x128xf32, #tpu.memory_space<vmem>>, vector<1x128xf32>
    %67 = arith.addf %66, %64 : vector<1x128xf32>
    %68 = arith.index_cast %59 : i32 to index
    %c0_27 = arith.constant 0 : index
    %69 = vector.load %arg17[%68, %c0_27] : memref<16x128xf32, #tpu.memory_space<vmem>>, vector<1x128xf32>
    tpu.vector_store %arg17[%68, %c0_27], %67 {strides = array<i32>} : memref<16x128xf32, #tpu.memory_space<vmem>>, vector<1x128xf32>,
    %c2_i32 = arith.constant 2 : i32
    %70 = arith.addi %39, %c2_i32 : i32
    %71 = arith.index_cast %70 : i32 to index
    %72 = memref.load %arg1[%71] : memref<24xi32, #tpu.memory_space<smem>>
    %73 = arith.index_cast %70 : i32 to index
    %74 = memref.load %arg2[%73] : memref<24xi32, #tpu.memory_space<smem>>
    %75 = arith.index_cast %72 : i32 to index
    %c0_28 = arith.constant 0 : index
    %76 = vector.load %arg16[%75, %c0_28] : memref<16x128xf32, #tpu.memory_space<vmem>>, vector<1x128xf32>
    %77 = arith.index_cast %c2_i32 : i32 to index
    %c0_29 = arith.constant 0 : index
    %78 = vector.load %arg18[%77, %c0_29] : memref<8x128xf32, #tpu.memory_space<vmem>>, vector<1x128xf32>
    %79 = arith.mulf %76, %78 : vector<1x128xf32>
    %80 = arith.index_cast %74 : i32 to index
    %c0_30 = arith.constant 0 : index
    %81 = vector.load %arg17[%80, %c0_30] : memref<16x128xf32, #tpu.memory_space<vmem>>, vector<1x128xf32>
    %82 = arith.addf %81, %79 : vector<1x128xf32>
    %83 = arith.index_cast %74 : i32 to index
    %c0_31 = arith.constant 0 : index
    %84 = vector.load %arg17[%83, %c0_31] : memref<16x128xf32, #tpu.memory_space<vmem>>, vector<1x128xf32>
    tpu.vector_store %arg17[%83, %c0_31], %82 {strides = array<i32>} : memref<16x128xf32, #tpu.memory_space<vmem>>, vector<1x128xf32>,
    %c3_i32 = arith.constant 3 : i32
    %85 = arith.addi %39, %c3_i32 : i32
    %86 = arith.index_cast %85 : i32 to index
    %87 = memref.load %arg1[%86] : memref<24xi32, #tpu.memory_space<smem>>
    %88 = arith.index_cast %85 : i32 to index
    %89 = memref.load %arg2[%88] : memref<24xi32, #tpu.memory_space<smem>>
    %90 = arith.index_cast %87 : i32 to index
    %c0_32 = arith.constant 0 : index
    %91 = vector.load %arg16[%90, %c0_32] : memref<16x128xf32, #tpu.memory_space<vmem>>, vector<1x128xf32>
    %92 = arith.index_cast %c3_i32 : i32 to index
    %c0_33 = arith.constant 0 : index
    %93 = vector.load %arg18[%92, %c0_33] : memref<8x128xf32, #tpu.memory_space<vmem>>, vector<1x128xf32>
    %94 = arith.mulf %91, %93 : vector<1x128xf32>
    %95 = arith.index_cast %89 : i32 to index
    %c0_34 = arith.constant 0 : index
    %96 = vector.load %arg17[%95, %c0_34] : memref<16x128xf32, #tpu.memory_space<vmem>>, vector<1x128xf32>
    %97 = arith.addf %96, %94 : vector<1x128xf32>
    %98 = arith.index_cast %89 : i32 to index
    %c0_35 = arith.constant 0 : index
    %99 = vector.load %arg17[%98, %c0_35] : memref<16x128xf32, #tpu.memory_space<vmem>>, vector<1x128xf32>
    tpu.vector_store %arg17[%98, %c0_35], %97 {strides = array<i32>} : memref<16x128xf32, #tpu.memory_space<vmem>>, vector<1x128xf32>,
    %c4_i32 = arith.constant 4 : i32
    %100 = arith.addi %39, %c4_i32 : i32
    %101 = arith.index_cast %100 : i32 to index
    %102 = memref.load %arg1[%101] : memref<24xi32, #tpu.memory_space<smem>>
    %103 = arith.index_cast %100 : i32 to index
    %104 = memref.load %arg2[%103] : memref<24xi32, #tpu.memory_space<smem>>
    %105 = arith.index_cast %102 : i32 to index
    %c0_36 = arith.constant 0 : index
    %106 = vector.load %arg16[%105, %c0_36] : memref<16x128xf32, #tpu.memory_space<vmem>>, vector<1x128xf32>
    %107 = arith.index_cast %c4_i32 : i32 to index
    %c0_37 = arith.constant 0 : index
    %108 = vector.load %arg18[%107, %c0_37] : memref<8x128xf32, #tpu.memory_space<vmem>>, vector<1x128xf32>
    %109 = arith.mulf %106, %108 : vector<1x128xf32>
    %110 = arith.index_cast %104 : i32 to index
    %c0_38 = arith.constant 0 : index
    %111 = vector.load %arg17[%110, %c0_38] : memref<16x128xf32, #tpu.memory_space<vmem>>, vector<1x128xf32>
    %112 = arith.addf %111, %109 : vector<1x128xf32>
    %113 = arith.index_cast %104 : i32 to index
    %c0_39 = arith.constant 0 : index
    %114 = vector.load %arg17[%113, %c0_39] : memref<16x128xf32, #tpu.memory_space<vmem>>, vector<1x128xf32>
    tpu.vector_store %arg17[%113, %c0_39], %112 {strides = array<i32>} : memref<16x128xf32, #tpu.memory_space<vmem>>, vector<1x128xf32>,
    %c5_i32 = arith.constant 5 : i32
    %115 = arith.addi %39, %c5_i32 : i32
    %116 = arith.index_cast %115 : i32 to index
    %117 = memref.load %arg1[%116] : memref<24xi32, #tpu.memory_space<smem>>
    %118 = arith.index_cast %115 : i32 to index
    %119 = memref.load %arg2[%118] : memref<24xi32, #tpu.memory_space<smem>>
    %120 = arith.index_cast %117 : i32 to index
    %c0_40 = arith.constant 0 : index
    %121 = vector.load %arg16[%120, %c0_40] : memref<16x128xf32, #tpu.memory_space<vmem>>, vector<1x128xf32>
    %122 = arith.index_cast %c5_i32 : i32 to index
    %c0_41 = arith.constant 0 : index
    %123 = vector.load %arg18[%122, %c0_41] : memref<8x128xf32, #tpu.memory_space<vmem>>, vector<1x128xf32>
    %124 = arith.mulf %121, %123 : vector<1x128xf32>
    %125 = arith.index_cast %119 : i32 to index
    %c0_42 = arith.constant 0 : index
    %126 = vector.load %arg17[%125, %c0_42] : memref<16x128xf32, #tpu.memory_space<vmem>>, vector<1x128xf32>
    %127 = arith.addf %126, %124 : vector<1x128xf32>
    %128 = arith.index_cast %119 : i32 to index
    %c0_43 = arith.constant 0 : index
    %129 = vector.load %arg17[%128, %c0_43] : memref<16x128xf32, #tpu.memory_space<vmem>>, vector<1x128xf32>
    tpu.vector_store %arg17[%128, %c0_43], %127 {strides = array<i32>} : memref<16x128xf32, #tpu.memory_space<vmem>>, vector<1x128xf32>,
    %c6_i32 = arith.constant 6 : i32
    %130 = arith.addi %39, %c6_i32 : i32
    %131 = arith.index_cast %130 : i32 to index
    %132 = memref.load %arg1[%131] : memref<24xi32, #tpu.memory_space<smem>>
    %133 = arith.index_cast %130 : i32 to index
    %134 = memref.load %arg2[%133] : memref<24xi32, #tpu.memory_space<smem>>
    %135 = arith.index_cast %132 : i32 to index
    %c0_44 = arith.constant 0 : index
    %136 = vector.load %arg16[%135, %c0_44] : memref<16x128xf32, #tpu.memory_space<vmem>>, vector<1x128xf32>
    %137 = arith.index_cast %c6_i32 : i32 to index
    %c0_45 = arith.constant 0 : index
    %138 = vector.load %arg18[%137, %c0_45] : memref<8x128xf32, #tpu.memory_space<vmem>>, vector<1x128xf32>
    %139 = arith.mulf %136, %138 : vector<1x128xf32>
    %140 = arith.index_cast %134 : i32 to index
    %c0_46 = arith.constant 0 : index
    %141 = vector.load %arg17[%140, %c0_46] : memref<16x128xf32, #tpu.memory_space<vmem>>, vector<1x128xf32>
    %142 = arith.addf %141, %139 : vector<1x128xf32>
    %143 = arith.index_cast %134 : i32 to index
    %c0_47 = arith.constant 0 : index
    %144 = vector.load %arg17[%143, %c0_47] : memref<16x128xf32, #tpu.memory_space<vmem>>, vector<1x128xf32>
    tpu.vector_store %arg17[%143, %c0_47], %142 {strides = array<i32>} : memref<16x128xf32, #tpu.memory_space<vmem>>, vector<1x128xf32>,
    %c7_i32 = arith.constant 7 : i32
    %145 = arith.addi %39, %c7_i32 : i32
    %146 = arith.index_cast %145 : i32 to index
    %147 = memref.load %arg1[%146] : memref<24xi32, #tpu.memory_space<smem>>
    %148 = arith.index_cast %145 : i32 to index
    %149 = memref.load %arg2[%148] : memref<24xi32, #tpu.memory_space<smem>>
    %150 = arith.index_cast %147 : i32 to index
    %c0_48 = arith.constant 0 : index
    %151 = vector.load %arg16[%150, %c0_48] : memref<16x128xf32, #tpu.memory_space<vmem>>, vector<1x128xf32>
    %152 = arith.index_cast %c7_i32 : i32 to index
    %c0_49 = arith.constant 0 : index
    %153 = vector.load %arg18[%152, %c0_49] : memref<8x128xf32, #tpu.memory_space<vmem>>, vector<1x128xf32>
    %154 = arith.mulf %151, %153 : vector<1x128xf32>
    %155 = arith.index_cast %149 : i32 to index
    %c0_50 = arith.constant 0 : index
    %156 = vector.load %arg17[%155, %c0_50] : memref<16x128xf32, #tpu.memory_space<vmem>>, vector<1x128xf32>
    %157 = arith.addf %156, %154 : vector<1x128xf32>
    %158 = arith.index_cast %149 : i32 to index
    %c0_51 = arith.constant 0 : index
    %159 = vector.load %arg17[%158, %c0_51] : memref<16x128xf32, #tpu.memory_space<vmem>>, vector<1x128xf32>
    tpu.vector_store %arg17[%158, %c0_51], %157 {strides = array<i32>} : memref<16x128xf32, #tpu.memory_space<vmem>>, vector<1x128xf32>,
    %c8_i32_52 = arith.constant 8 : i32
    %c2_i32_53 = arith.constant 2 : i32
    %160 = arith.cmpi eq, %arg0, %c2_i32_53 : i32
    %161 = arith.extui %160 : i1 to i32
    %c0_i32_54 = arith.constant 0 : i32
    %162 = arith.cmpi ne, %161, %c0_i32_54 : i32
    scf.if %162 {
      %c0_55 = arith.constant 0 : index
      %c0_56 = arith.constant 0 : index
      %163 = vector.load %arg17[%c0_55, %c0_56] : memref<16x128xf32, #tpu.memory_space<vmem>>, vector<16x128xf32>
      %c0_57 = arith.constant 0 : index
      %c0_58 = arith.constant 0 : index
      %164 = vector.load %arg11[%c0_57, %c0_58] : memref<128x128xf32, #tpu.memory_space<vmem>>, vector<128x128xf32>
      %cst_59 = arith.constant dense<0.000000e+00> : vector<16x128xf32>
      %165 = tpu.matmul %163, %164, %cst_59 {dimension_numbers = #tpu.dot_dimension_numbers<[1], [0], [0], [1], [0, 0, 1, 1], [], []>} : vector<16x128xf32>, vector<128x128xf32>, vector<16x128xf32> -> vector<16x128xf32>
      %c0_60 = arith.constant 0 : index
      %c0_61 = arith.constant 0 : index
      %166 = vector.load %arg12[%c0_60, %c0_61] : memref<1x128xf32, #tpu.memory_space<vmem>>, vector<1x128xf32>
      %167 = vector.broadcast %166 : vector<1x128xf32> to vector<16x128xf32>
      %168 = arith.addf %165, %167 : vector<16x128xf32>
      %cst_62 = arith.constant 0.000000e+00 : f32
      %169 = vector.broadcast %cst_62 : f32 to vector<16x128xf32>
      %170 = arith.maximumf %168, %169 : vector<16x128xf32>
      %171 = vector.broadcast %cst_62 : f32 to vector<16x128xf32>
      %172 = arith.subf %168, %171 : vector<16x128xf32>
      %173 = arith.cmpf one, %172, %172 : vector<16x128xf32>
      %174 = vector.broadcast %cst_62 : f32 to vector<16x128xf32>
      %175 = arith.addf %168, %174 : vector<16x128xf32>
      %176 = math.absf %172 : vector<16x128xf32>
      %cst_63 = arith.constant 0.000000e+00 : f32
      %177 = vector.broadcast %cst_63 : f32 to vector<16x128xf32>
      %178 = arith.subf %177, %176 : vector<16x128xf32>
      %179 = math.exp %178 : vector<16x128xf32>
      %180 = math.log1p %179 : vector<16x128xf32>
      %181 = arith.addf %170, %180 : vector<16x128xf32>
      %182 = arith.select %173, %175, %181 : vector<16x128xi1>, vector<16x128xf32>
      %cst_64 = arith.constant 2.000000e+00 : f32
      %183 = math.log %cst_64 : f32
      %184 = vector.broadcast %183 : f32 to vector<16x128xf32>
      %185 = arith.subf %182, %184 : vector<16x128xf32>
      %c0_65 = arith.constant 0 : index
      %c0_66 = arith.constant 0 : index
      %186 = vector.load %arg13[%c0_65, %c0_66] : memref<128x128xf32, #tpu.memory_space<vmem>>, vector<128x128xf32>
      %cst_67 = arith.constant dense<0.000000e+00> : vector<16x128xf32>
      %187 = tpu.matmul %185, %186, %cst_67 {dimension_numbers = #tpu.dot_dimension_numbers<[1], [0], [0], [1], [0, 0, 1, 1], [], []>} : vector<16x128xf32>, vector<128x128xf32>, vector<16x128xf32> -> vector<16x128xf32>
      %c0_68 = arith.constant 0 : index
      %c0_69 = arith.constant 0 : index
      %188 = vector.load %arg14[%c0_68, %c0_69] : memref<1x128xf32, #tpu.memory_space<vmem>>, vector<1x128xf32>
      %189 = vector.broadcast %188 : vector<1x128xf32> to vector<16x128xf32>
      %190 = arith.addf %187, %189 : vector<16x128xf32>
      %c0_70 = arith.constant 0 : index
      %c0_71 = arith.constant 0 : index
      %191 = vector.load %arg15[%c0_70, %c0_71] : memref<16x128xf32, #tpu.memory_space<vmem>>, vector<16x128xf32>
      tpu.vector_store %arg15[%c0_70, %c0_71], %190 {strides = array<i32>} : memref<16x128xf32, #tpu.memory_space<vmem>>, vector<16x128xf32>,
    } else {
    }
    return
  }
  func.func @transform_0(%arg0: i32, %arg1: memref<24xi32, #tpu.memory_space<smem>>, %arg2: memref<24xi32, #tpu.memory_space<smem>>) -> (i32, i32) {
    %c0_i32 = arith.constant 0 : i32
    %c0_i32_0 = arith.constant 0 : i32
    %c0_i32_1 = arith.constant 0 : i32
    return %c0_i32, %c0_i32_0 : i32, i32
  }
  func.func @transform_1(%arg0: i32, %arg1: memref<24xi32, #tpu.memory_space<smem>>, %arg2: memref<24xi32, #tpu.memory_space<smem>>) -> (i32, i32) {
    %c0_i32 = arith.constant 0 : i32
    %c0_i32_0 = arith.constant 0 : i32
    return %arg0, %c0_i32 : i32, i32
  }
  func.func @transform_2(%arg0: i32, %arg1: memref<24xi32, #tpu.memory_space<smem>>, %arg2: memref<24xi32, #tpu.memory_space<smem>>) -> (i32, i32) {
    %c0_i32 = arith.constant 0 : i32
    %c0_i32_0 = arith.constant 0 : i32
    return %arg0, %c0_i32 : i32, i32
  }
  func.func @transform_3(%arg0: i32, %arg1: memref<24xi32, #tpu.memory_space<smem>>, %arg2: memref<24xi32, #tpu.memory_space<smem>>) -> (i32, i32) {
    %c0_i32 = arith.constant 0 : i32
    %c0_i32_0 = arith.constant 0 : i32
    %c0_i32_1 = arith.constant 0 : i32
    return %c0_i32, %c0_i32_0 : i32, i32
  }
  func.func @transform_4(%arg0: i32, %arg1: memref<24xi32, #tpu.memory_space<smem>>, %arg2: memref<24xi32, #tpu.memory_space<smem>>) -> (i32, i32) {
    %c0_i32 = arith.constant 0 : i32
    %c0_i32_0 = arith.constant 0 : i32
    %c0_i32_1 = arith.constant 0 : i32
    return %c0_i32, %c0_i32_0 : i32, i32
  }
  func.func @transform_5(%arg0: i32, %arg1: memref<24xi32, #tpu.memory_space<smem>>, %arg2: memref<24xi32, #tpu.memory_space<smem>>) -> (i32, i32) {
    %c0_i32 = arith.constant 0 : i32
    %c0_i32_0 = arith.constant 0 : i32
    %c0_i32_1 = arith.constant 0 : i32
    return %c0_i32, %c0_i32_0 : i32, i32
  }
  func.func @transform_6(%arg0: i32, %arg1: memref<24xi32, #tpu.memory_space<smem>>, %arg2: memref<24xi32, #tpu.memory_space<smem>>) -> (i32, i32) {
    %c0_i32 = arith.constant 0 : i32
    %c0_i32_0 = arith.constant 0 : i32
    %c0_i32_1 = arith.constant 0 : i32
    return %c0_i32, %c0_i32_0 : i32, i32
  }
  func.func @transform_7(%arg0: i32, %arg1: memref<24xi32, #tpu.memory_space<smem>>, %arg2: memref<24xi32, #tpu.memory_space<smem>>) -> (i32, i32) {
    %c0_i32 = arith.constant 0 : i32
    %c0_i32_0 = arith.constant 0 : i32
    %c0_i32_1 = arith.constant 0 : i32
    return %c0_i32, %c0_i32_0 : i32, i32
  }
  func.func @transform_8(%arg0: i32, %arg1: memref<24xi32, #tpu.memory_space<smem>>, %arg2: memref<24xi32, #tpu.memory_space<smem>>) -> (i32, i32) {
    %c0_i32 = arith.constant 0 : i32
    %c0_i32_0 = arith.constant 0 : i32
    %c0_i32_1 = arith.constant 0 : i32
    return %c0_i32, %c0_i32_0 : i32, i32
  }
  func.func @transform_9(%arg0: i32, %arg1: memref<24xi32, #tpu.memory_space<smem>>, %arg2: memref<24xi32, #tpu.memory_space<smem>>) -> (i32, i32) {
    %c0_i32 = arith.constant 0 : i32
    %c0_i32_0 = arith.constant 0 : i32
    %c0_i32_1 = arith.constant 0 : i32
    return %c0_i32, %c0_i32_0 : i32, i32
  }
  func.func @transform_10(%arg0: i32, %arg1: memref<24xi32, #tpu.memory_space<smem>>, %arg2: memref<24xi32, #tpu.memory_space<smem>>) -> (i32, i32) {
    %c0_i32 = arith.constant 0 : i32
    %c0_i32_0 = arith.constant 0 : i32
    %c0_i32_1 = arith.constant 0 : i32
    return %c0_i32, %c0_i32_0 : i32, i32
  }
  func.func @transform_11(%arg0: i32, %arg1: memref<24xi32, #tpu.memory_space<smem>>, %arg2: memref<24xi32, #tpu.memory_space<smem>>) -> (i32, i32) {
    %c0_i32 = arith.constant 0 : i32
    %c0_i32_0 = arith.constant 0 : i32
    %c0_i32_1 = arith.constant 0 : i32
    return %c0_i32, %c0_i32_0 : i32, i32
  }
  func.func @transform_12(%arg0: i32, %arg1: memref<24xi32, #tpu.memory_space<smem>>, %arg2: memref<24xi32, #tpu.memory_space<smem>>) -> (i32, i32) {
    %c0_i32 = arith.constant 0 : i32
    %c0_i32_0 = arith.constant 0 : i32
    %c0_i32_1 = arith.constant 0 : i32
    return %c0_i32, %c0_i32_0 : i32, i32
  }
}

</mosaic_0001>

<llo_original>
// kernel: tpu_custom_call.1
$region0: #{tpu_custom_call.1}
  #allocation0 [shape = 'u32[]', space=smem, size = 0x4, offset = 0x4, fixed_abs, tag = 'smem constant byte address 0x4 - core index']
  #allocation1 [shape = 'u32[144,128]{1,0:T(1,128)}', space=vmem, size = 0x12000, scoped, tag = 'internal scratch']
  #allocation2 [shape = 'f32[16,128]{1,0:T(8,128)}', space=vmem, size = 0x2000, scoped, tag = 'scratch operand']
  #allocation3 [shape = 'f32[16,128]{1,0:T(8,128)}', space=vmem, size = 0x2000, scoped, tag = 'scratch operand']
  #allocation4 [shape = 'f32[8,128]{1,0:T(8,128)}', space=vmem, size = 0x1000, scoped, tag = 'scratch operand']
  #allocation5 [shape = 's32[1]{0}', space=sflag, size = 0x4, scoped, tag = 'scoped memory for tpu_custom_call.1']
  #allocation6 [shape = 'u8[512]{0}', space=smem, size = 0x200, scoped, tag = 'prefetched SMEM operand 0']
  #allocation7 [shape = 'u8[512]{0}', space=smem, size = 0x200, scoped, tag = 'prefetched SMEM operand 1']
  %s0 = inlined_call_operand.vmem [shape: s32[24], index: 0, kind: input, shape index: {}]
  %s1 = inlined_call_operand.vmem [shape: s32[24], index: 1, kind: input, shape index: {}]
  %s2 = inlined_call_operand.hbm [shape: f32[16,128], index: 2, kind: input, shape index: {}]
  %s3 = inlined_call_operand.vmem [shape: f32[24,1], index: 3, kind: input, shape index: {}]
  %s4 = inlined_call_operand.vmem [shape: f32[24,128], index: 4, kind: input, shape index: {}]
  %s5 = inlined_call_operand.hbm [shape: f32[128,128], index: 5, kind: input, shape index: {}]
  %s6 = inlined_call_operand.vmem [shape: f32[1,128], index: 6, kind: input, shape index: {}]
  %s7 = inlined_call_operand.hbm [shape: f32[128,128], index: 7, kind: input, shape index: {}]
  %s8 = inlined_call_operand.vmem [shape: f32[1,128], index: 8, kind: input, shape index: {}]
  %s9 = inlined_call_operand.hbm [shape: f32[128,128], index: 9, kind: input, shape index: {}]
  %s10 = inlined_call_operand.hbm [shape: f32[128,128], index: 10, kind: input, shape index: {}]
  %s11 = inlined_call_operand.vmem [shape: f32[1,128], index: 11, kind: input, shape index: {}]
  %s12 = inlined_call_operand.hbm [shape: f32[128,128], index: 12, kind: input, shape index: {}]
  %s13 = inlined_call_operand.vmem [shape: f32[1,128], index: 13, kind: input, shape index: {}]
  %s14 = inlined_call_operand.hbm [shape: f32[16,128], index: 14, kind: output, shape index: {}]
  %s15 = sld [smem:[#allocation0]]
  $region113: #{tpu_custom_call.1} parent=0
    _
  %s17 = ssub.s32 1, %s15
  %s18 = scalar_select 0, %s17, %s15
  %s19 = sshll.u32 %s0, 4
  %s20 = int_to_ptr.vmem [resolvable:$true] %s19
  %22 = dma.vmem_to_smem %s20, 16, [#allocation6], [#allocation5]
  %s23 = sshll.u32 %s1, 4
  %s24 = int_to_ptr.vmem [resolvable:$true] %s23
  %26 = dma.vmem_to_smem %s24, 16, [#allocation7], [#allocation5]
  %27 = dma.done [#allocation5], 32
  %28 = sfence
  $region1: #{tpu_custom_call.1} parent=0
    #allocation8 [shape = 'u8[8192]{0}', space=vmem, size = 0x2000, scoped, tag = 'input window, operand 2, single buffered']
    #allocation9 [shape = 's32[2]{0}', space=sflag, size = 0x8, scoped, tag = 'scoped memory for tpu_custom_call.1']
    #allocation10 [shape = 's32[2]{0}', space=sflag, size = 0x8, scoped, tag = 'scoped memory for tpu_custom_call.1']
    #allocation11 [shape = 'u8[65536]{0}', space=vmem, size = 0x10000, scoped, tag = 'input window, operand 5, single buffered']
    #allocation12 [shape = 's32[1]{0}', space=sflag, size = 0x4, scoped, tag = 'scoped memory for tpu_custom_call.1']
    #allocation13 [shape = 'u8[65536]{0}', space=vmem, size = 0x10000, scoped, tag = 'input window, operand 7, single buffered']
    #allocation14 [shape = 'u8[65536]{0}', space=vmem, size = 0x10000, scoped, tag = 'input window, operand 9, single buffered']
    #allocation15 [shape = 's32[1]{0}', space=sflag, size = 0x4, scoped, tag = 'scoped memory for tpu_custom_call.1']
    #allocation16 [shape = 'u8[65536]{0}', space=vmem, size = 0x10000, scoped, tag = 'input window, operand 10, single buffered']
    #allocation17 [shape = 'u8[65536]{0}', space=vmem, size = 0x10000, scoped, tag = 'input window, operand 12, single buffered']
    #allocation18 [shape = 's32[1]{0}', space=sflag, size = 0x4, scoped, tag = 'scoped memory for tpu_custom_call.1']
    #allocation19 [shape = 'u8[8192]{0}', space=vmem, size = 0x2000, scoped, tag = 'output window, operand 0, single buffered']
    %29 = vsyncpa [#allocation9], 0
    %30 = vsyncpa [#allocation12], 0
    %31 = vsyncpa [#allocation15], 0
    %32 = vsyncpa [#allocation18], 0
    %33 = vsyncpa [#allocation10], 0
    loop: start=0, step=1, limit=5
    $region2: #{tpu_custom_call.1} parent=1 // loop_pre_header
      _
    $region3: #{tpu_custom_call.1} parent=1 // loop_header
      %s35 = sphi 0, %s39
      %p36 = scmp.ge.s32.totalorder %s35, 5
      %s43 = sphi 0, %s43
      %s45 = sphi 0, %s43
      %s46 = sphi 0, %s45
      %s60 = sphi 0, %s46
      %s66 = sphi 0, %s68
      %s69 = sphi 0, %s66
      %s70 = sphi 0, %s69
      %s86 = sphi 0, %s70
      %s92 = sphi 0, %s94
      %s95 = sphi 0, %s92
      %s96 = sphi 0, %s95
      %s112 = sphi 0, %s96
      %s116 = sphi 0, %s116
      %s118 = sphi 0, %s116
      %s119 = sphi 0, %s118
      %s133 = sphi 0, %s119
      %s137 = sphi 0, %s137
      %s139 = sphi 0, %s137
      %s140 = sphi 0, %s139
      %s154 = sphi 0, %s140
      %s158 = sphi 0, %s158
      %s160 = sphi 0, %s158
      %s161 = sphi 0, %s160
      %s175 = sphi 0, %s161
      %s179 = sphi 0, %s179
      %s181 = sphi 0, %s179
      %s182 = sphi 0, %s181
      %s196 = sphi 0, %s182
      %s200 = sphi 0, %s200
      %s202 = sphi 0, %s200
      %s203 = sphi 0, %s202
      %s217 = sphi 0, %s203
      %s221 = sphi 0, %s221
      %s223 = sphi 0, %s221
      %s224 = sphi 0, %s223
      %s238 = sphi 0, %s224
      %s242 = sphi 0, %s242
      %s244 = sphi 0, %s242
      %s245 = sphi 0, %s244
      %s259 = sphi 0, %s245
      %s263 = sphi 0, %s263
      %s265 = sphi 0, %s263
      %s266 = sphi 0, %s265
      %s280 = sphi 0, %s266
      %s284 = sphi 0, %s284
      %s286 = sphi 0, %s284
      %s287 = sphi 0, %s286
      %s301 = sphi 0, %s287
      %s305 = sphi 0, %s305
      %s307 = sphi 0, %s305
      %s308 = sphi 0, %s307
      %s322 = sphi 0, %s308
    $region4: #{tpu_custom_call.1} parent=1 // loop_header_branch
      %38 = sbr.rel (%p36) target = $region8
    $region5: #{tpu_custom_call.1} parent=1 // loop_body
      %s40 = ssub.s32 %s35, 1
      %s41 = ssub.s32 %s35, 2
      %s42 = sadd.s32 %s35, 1
      %s44 = sadd.s32 %s43, 1
      %p47 = scmp.eq.s32.totalorder %s35, 2
      %p48 = scmp.ne.s32.totalorder %s43, %s45
      %p49 = scmp.eq.s32.totalorder %s35, 0
      %p50 = por %p48, %p49
      %p51 = scmp.ne.s32.totalorder %s43, %s45
      %p52 = scmp.eq.s32.totalorder %s40, 2
      %p53 = por %p51, %p52
      %p54 = scmp.ne.s32.totalorder %s45, %s46
      %p55 = scmp.eq.s32.totalorder %s40, 0
      %p56 = por %p54, %p55
      %p57 = scmp.ne.s32.totalorder %s45, %s46
      %p58 = scmp.eq.s32.totalorder %s41, 2
      %p59 = por %p57, %p58
      %p61 = scmp.ne.s32.totalorder %s46, %s60
      %p62 = scmp.eq.s32.totalorder %s41, 0
      %p63 = por %p61, %p62
      %s64 = ssub.s32 %s35, %s42
      %p65 = scmp.eq.s32.totalorder %s64, 0
      %s67 = sadd.s32 %s66, 1
      %s68 = scalar_select %p65, %s66, %s67
      %p71 = pneg %p65
      %p72 = scmp.eq.s32.totalorder %s35, 2
      %p73 = por %p71, %p72
      %p74 = scmp.ne.s32.totalorder %s66, %s69
      %p75 = scmp.eq.s32.totalorder %s35, 0
      %p76 = por %p74, %p75
      %p77 = scmp.ne.s32.totalorder %s66, %s69
      %p78 = scmp.eq.s32.totalorder %s40, 2
      %p79 = por %p77, %p78
      %p80 = scmp.ne.s32.totalorder %s69, %s70
      %p81 = scmp.eq.s32.totalorder %s40, 0
      %p82 = por %p80, %p81
      %p83 = scmp.ne.s32.totalorder %s69, %s70
      %p84 = scmp.eq.s32.totalorder %s41, 2
      %p85 = por %p83, %p84
      %p87 = scmp.ne.s32.totalorder %s70, %s86
      %p88 = scmp.eq.s32.totalorder %s41, 0
      %p89 = por %p87, %p88
      %s90 = ssub.s32 %s35, %s42
      %p91 = scmp.eq.s32.totalorder %s90, 0
      %s93 = sadd.s32 %s92, 1
      %s94 = scalar_select %p91, %s92, %s93
      %p97 = pneg %p91
      %p98 = scmp.eq.s32.totalorder %s35, 2
      %p99 = por %p97, %p98
      %p100 = scmp.ne.s32.totalorder %s92, %s95
      %p101 = scmp.eq.s32.totalorder %s35, 0
      %p102 = por %p100, %p101
      %p103 = scmp.ne.s32.totalorder %s92, %s95
      %p104 = scmp.eq.s32.totalorder %s40, 2
      %p105 = por %p103, %p104
      %p106 = scmp.ne.s32.totalorder %s95, %s96
      %p107 = scmp.eq.s32.totalorder %s40, 0
      %p108 = por %p106, %p107
      %p109 = scmp.ne.s32.totalorder %s95, %s96
      %p110 = scmp.eq.s32.totalorder %s41, 2
      %p111 = por %p109, %p110
      %p113 = scmp.ne.s32.totalorder %s96, %s112
      %p114 = scmp.eq.s32.totalorder %s41, 0
      %p115 = por %p113, %p114
      %s117 = sadd.s32 %s116, 1
      %p120 = scmp.eq.s32.totalorder %s35, 2
      %p121 = scmp.ne.s32.totalorder %s116, %s118
      %p122 = scmp.eq.s32.totalorder %s35, 0
      %p123 = por %p121, %p122
      %p124 = scmp.ne.s32.totalorder %s116, %s118
      %p125 = scmp.eq.s32.totalorder %s40, 2
      %p126 = por %p124, %p125
      %p127 = scmp.ne.s32.totalorder %s118, %s119
      %p128 = scmp.eq.s32.totalorder %s40, 0
      %p129 = por %p127, %p128
      %p130 = scmp.ne.s32.totalorder %s118, %s119
      %p131 = scmp.eq.s32.totalorder %s41, 2
      %p132 = por %p130, %p131
      %p134 = scmp.ne.s32.totalorder %s119, %s133
      %p135 = scmp.eq.s32.totalorder %s41, 0
      %p136 = por %p134, %p135
      %s138 = sadd.s32 %s137, 1
      %p141 = scmp.eq.s32.totalorder %s35, 2
      %p142 = scmp.ne.s32.totalorder %s137, %s139
      %p143 = scmp.eq.s32.totalorder %s35, 0
      %p144 = por %p142, %p143
      %p145 = scmp.ne.s32.totalorder %s137, %s139
      %p146 = scmp.eq.s32.totalorder %s40, 2
      %p147 = por %p145, %p146
      %p148 = scmp.ne.s32.totalorder %s139, %s140
      %p149 = scmp.eq.s32.totalorder %s40, 0
      %p150 = por %p148, %p149
      %p151 = scmp.ne.s32.totalorder %s139, %s140
      %p152 = scmp.eq.s32.totalorder %s41, 2
      %p153 = por %p151, %p152
      %p155 = scmp.ne.s32.totalorder %s140, %s154
      %p156 = scmp.eq.s32.totalorder %s41, 0
      %p157 = por %p155, %p156
      %s159 = sadd.s32 %s158, 1
      %p162 = scmp.eq.s32.totalorder %s35, 2
      %p163 = scmp.ne.s32.totalorder %s158, %s160
      %p164 = scmp.eq.s32.totalorder %s35, 0
      %p165 = por %p163, %p164
      %p166 = scmp.ne.s32.totalorder %s158, %s160
      %p167 = scmp.eq.s32.totalorder %s40, 2
      %p168 = por %p166, %p167
      %p169 = scmp.ne.s32.totalorder %s160, %s161
      %p170 = scmp.eq.s32.totalorder %s40, 0
      %p171 = por %p169, %p170
      %p172 = scmp.ne.s32.totalorder %s160, %s161
      %p173 = scmp.eq.s32.totalorder %s41, 2
      %p174 = por %p172, %p173
      %p176 = scmp.ne.s32.totalorder %s161, %s175
      %p177 = scmp.eq.s32.totalorder %s41, 0
      %p178 = por %p176, %p177
      %s180 = sadd.s32 %s179, 1
      %p183 = scmp.eq.s32.totalorder %s35, 2
      %p184 = scmp.ne.s32.totalorder %s179, %s181
      %p185 = scmp.eq.s32.totalorder %s35, 0
      %p186 = por %p184, %p185
      %p187 = scmp.ne.s32.totalorder %s179, %s181
      %p188 = scmp.eq.s32.totalorder %s40, 2
      %p189 = por %p187, %p188
      %p190 = scmp.ne.s32.totalorder %s181, %s182
      %p191 = scmp.eq.s32.totalorder %s40, 0
      %p192 = por %p190, %p191
      %p193 = scmp.ne.s32.totalorder %s181, %s182
      %p194 = scmp.eq.s32.totalorder %s41, 2
      %p195 = por %p193, %p194
      %p197 = scmp.ne.s32.totalorder %s182, %s196
      %p198 = scmp.eq.s32.totalorder %s41, 0
      %p199 = por %p197, %p198
      %s201 = sadd.s32 %s200, 1
      %p204 = scmp.eq.s32.totalorder %s35, 2
      %p205 = scmp.ne.s32.totalorder %s200, %s202
      %p206 = scmp.eq.s32.totalorder %s35, 0
      %p207 = por %p205, %p206
      %p208 = scmp.ne.s32.totalorder %s200, %s202
      %p209 = scmp.eq.s32.totalorder %s40, 2
      %p210 = por %p208, %p209
      %p211 = scmp.ne.s32.totalorder %s202, %s203
      %p212 = scmp.eq.s32.totalorder %s40, 0
      %p213 = por %p211, %p212
      %p214 = scmp.ne.s32.totalorder %s202, %s203
      %p215 = scmp.eq.s32.totalorder %s41, 2
      %p216 = por %p214, %p215
      %p218 = scmp.ne.s32.totalorder %s203, %s217
      %p219 = scmp.eq.s32.totalorder %s41, 0
      %p220 = por %p218, %p219
      %s222 = sadd.s32 %s221, 1
      %p225 = scmp.eq.s32.totalorder %s35, 2
      %p226 = scmp.ne.s32.totalorder %s221, %s223
      %p227 = scmp.eq.s32.totalorder %s35, 0
      %p228 = por %p226, %p227
      %p229 = scmp.ne.s32.totalorder %s221, %s223
      %p230 = scmp.eq.s32.totalorder %s40, 2
      %p231 = por %p229, %p230
      %p232 = scmp.ne.s32.totalorder %s223, %s224
      %p233 = scmp.eq.s32.totalorder %s40, 0
      %p234 = por %p232, %p233
      %p235 = scmp.ne.s32.totalorder %s223, %s224
      %p236 = scmp.eq.s32.totalorder %s41, 2
      %p237 = por %p235, %p236
      %p239 = scmp.ne.s32.totalorder %s224, %s238
      %p240 = scmp.eq.s32.totalorder %s41, 0
      %p241 = por %p239, %p240
      %s243 = sadd.s32 %s242, 1
      %p246 = scmp.eq.s32.totalorder %s35, 2
      %p247 = scmp.ne.s32.totalorder %s242, %s244
      %p248 = scmp.eq.s32.totalorder %s35, 0
      %p249 = por %p247, %p248
      %p250 = scmp.ne.s32.totalorder %s242, %s244
      %p251 = scmp.eq.s32.totalorder %s40, 2
      %p252 = por %p250, %p251
      %p253 = scmp.ne.s32.totalorder %s244, %s245
      %p254 = scmp.eq.s32.totalorder %s40, 0
      %p255 = por %p253, %p254
      %p256 = scmp.ne.s32.totalorder %s244, %s245
      %p257 = scmp.eq.s32.totalorder %s41, 2
      %p258 = por %p256, %p257
      %p260 = scmp.ne.s32.totalorder %s245, %s259
      %p261 = scmp.eq.s32.totalorder %s41, 0
      %p262 = por %p260, %p261
      %s264 = sadd.s32 %s263, 1
      %p267 = scmp.eq.s32.totalorder %s35, 2
      %p268 = scmp.ne.s32.totalorder %s263, %s265
      %p269 = scmp.eq.s32.totalorder %s35, 0
      %p270 = por %p268, %p269
      %p271 = scmp.ne.s32.totalorder %s263, %s265
      %p272 = scmp.eq.s32.totalorder %s40, 2
      %p273 = por %p271, %p272
      %p274 = scmp.ne.s32.totalorder %s265, %s266
      %p275 = scmp.eq.s32.totalorder %s40, 0
      %p276 = por %p274, %p275
      %p277 = scmp.ne.s32.totalorder %s265, %s266
      %p278 = scmp.eq.s32.totalorder %s41, 2
      %p279 = por %p277, %p278
      %p281 = scmp.ne.s32.totalorder %s266, %s280
      %p282 = scmp.eq.s32.totalorder %s41, 0
      %p283 = por %p281, %p282
      %s285 = sadd.s32 %s284, 1
      %p288 = scmp.eq.s32.totalorder %s35, 2
      %p289 = scmp.ne.s32.totalorder %s284, %s286
      %p290 = scmp.eq.s32.totalorder %s35, 0
      %p291 = por %p289, %p290
      %p292 = scmp.ne.s32.totalorder %s284, %s286
      %p293 = scmp.eq.s32.totalorder %s40, 2
      %p294 = por %p292, %p293
      %p295 = scmp.ne.s32.totalorder %s286, %s287
      %p296 = scmp.eq.s32.totalorder %s40, 0
      %p297 = por %p295, %p296
      %p298 = scmp.ne.s32.totalorder %s286, %s287
      %p299 = scmp.eq.s32.totalorder %s41, 2
      %p300 = por %p298, %p299
      %p302 = scmp.ne.s32.totalorder %s287, %s301
      %p303 = scmp.eq.s32.totalorder %s41, 0
      %p304 = por %p302, %p303
      %s306 = sadd.s32 %s305, 1
      %p309 = scmp.eq.s32.totalorder %s35, 2
      %p310 = scmp.ne.s32.totalorder %s305, %s307
      %p311 = scmp.eq.s32.totalorder %s35, 0
      %p312 = por %p310, %p311
      %p313 = scmp.ne.s32.totalorder %s305, %s307
      %p314 = scmp.eq.s32.totalorder %s40, 2
      %p315 = por %p313, %p314
      %p316 = scmp.ne.s32.totalorder %s307, %s308
      %p317 = scmp.eq.s32.totalorder %s40, 0
      %p318 = por %p316, %p317
      %p319 = scmp.ne.s32.totalorder %s307, %s308
      %p320 = scmp.eq.s32.totalorder %s41, 2
      %p321 = por %p319, %p320
      %p323 = scmp.ne.s32.totalorder %s308, %s322
      %p324 = scmp.eq.s32.totalorder %s41, 0
      %p325 = por %p323, %p324
      %p326 = scmp.le.s32.totalorder 1, %s35
      %p327 = scmp.lt.s32.totalorder %s35, 4
      %p328 = pnand %p326, %p327
      %p329 = pneg %p328
      // Predicated region
      $region9: #{tpu_custom_call.1} parent=5 // pred_check
        _
      $region10: #{tpu_custom_call.1} parent=5 // pred_check_branch
        %331 = sbr.rel (%p328) target = $region12
      $region11: #{tpu_custom_call.1} parent=5 // pred_region
        %s332 = ssub.s32 %s35, 1
        // Predicated region
        $region13: #{tpu_custom_call.1} parent=11 // pred_check
          %p333 = pneg %p56
        $region14: #{tpu_custom_call.1} parent=11 // pred_check_branch
          %335 = sbr.rel (%p333) target = $region16
        $region15: #{tpu_custom_call.1} parent=11 // pred_region
          %s337 = ssub.s32 256, 256
          %338 = vsyncadd [#allocation9], %s337
          %s339 = sshll.u32 [#allocation8], 4
          %s340 = int_to_ptr.vmem [resolvable:$true] %s339
          %345 = dma.hbm_to_vmem [thread:$0]  %s2, 256, %s340, [#allocation9], 128, 128, 8
        $region16: #{tpu_custom_call.1} parent=11 // pred_fallthru
          _
        // Predicated region
        $region17: #{tpu_custom_call.1} parent=11 // pred_check
          %p346 = pneg %p129
        $region18: #{tpu_custom_call.1} parent=11 // pred_check_branch
          %348 = sbr.rel (%p346) target = $region20
        $region19: #{tpu_custom_call.1} parent=11 // pred_region
          %s350 = ssub.s32 2048, 2048
          %351 = vsyncadd [#allocation12], %s350
          %s352 = sshll.u32 [#allocation11], 4
          %s353 = int_to_ptr.vmem [resolvable:$true] %s352
          %358 = dma.hbm_to_vmem [thread:$0]  %s5, 2048, %s353, [#allocation12], 128, 128, 8
        $region20: #{tpu_custom_call.1} parent=11 // pred_fallthru
          _
        // Predicated region
        $region21: #{tpu_custom_call.1} parent=11 // pred_check
          %p359 = pneg %p150
        $region22: #{tpu_custom_call.1} parent=11 // pred_check_branch
          %361 = sbr.rel (%p359) target = $region24
        $region23: #{tpu_custom_call.1} parent=11 // pred_region
          _
        $region24: #{tpu_custom_call.1} parent=11 // pred_fallthru
          _
        // Predicated region
        $region25: #{tpu_custom_call.1} parent=11 // pred_check
          %p362 = pneg %p171
        $region26: #{tpu_custom_call.1} parent=11 // pred_check_branch
          %364 = sbr.rel (%p362) target = $region28
        $region27: #{tpu_custom_call.1} parent=11 // pred_region
          %s366 = ssub.s32 2048, 2048
          %367 = vsyncadd [#allocation12], %s366
          %s368 = sshll.u32 [#allocation13], 4
          %s369 = int_to_ptr.vmem [resolvable:$true] %s368
          %374 = dma.hbm_to_vmem [thread:$0]  %s7, 2048, %s369, [#allocation12], 128, 128, 8
        $region28: #{tpu_custom_call.1} parent=11 // pred_fallthru
          _
        // Predicated region
        $region29: #{tpu_custom_call.1} parent=11 // pred_check
          %p375 = pneg %p192
        $region30: #{tpu_custom_call.1} parent=11 // pred_check_branch
          %377 = sbr.rel (%p375) target = $region32
        $region31: #{tpu_custom_call.1} parent=11 // pred_region
          _
        $region32: #{tpu_custom_call.1} parent=11 // pred_fallthru
          _
        // Predicated region
        $region33: #{tpu_custom_call.1} parent=11 // pred_check
          %p378 = pneg %p213
        $region34: #{tpu_custom_call.1} parent=11 // pred_check_branch
          %380 = sbr.rel (%p378) target = $region36
        $region35: #{tpu_custom_call.1} parent=11 // pred_region
          %s382 = ssub.s32 2048, 2048
          %383 = vsyncadd [#allocation15], %s382
          %s384 = sshll.u32 [#allocation14], 4
          %s385 = int_to_ptr.vmem [resolvable:$true] %s384
          %390 = dma.hbm_to_vmem [thread:$0]  %s9, 2048, %s385, [#allocation15], 128, 128, 8
        $region36: #{tpu_custom_call.1} parent=11 // pred_fallthru
          _
        // Predicated region
        $region37: #{tpu_custom_call.1} parent=11 // pred_check
          %p391 = pneg %p234
        $region38: #{tpu_custom_call.1} parent=11 // pred_check_branch
          %393 = sbr.rel (%p391) target = $region40
        $region39: #{tpu_custom_call.1} parent=11 // pred_region
          %s395 = ssub.s32 2048, 2048
          %396 = vsyncadd [#allocation15], %s395
          %s397 = sshll.u32 [#allocation16], 4
          %s398 = int_to_ptr.vmem [resolvable:$true] %s397
          %403 = dma.hbm_to_vmem [thread:$0]  %s10, 2048, %s398, [#allocation15], 128, 128, 8
        $region40: #{tpu_custom_call.1} parent=11 // pred_fallthru
          _
        // Predicated region
        $region41: #{tpu_custom_call.1} parent=11 // pred_check
          %p404 = pneg %p255
        $region42: #{tpu_custom_call.1} parent=11 // pred_check_branch
          %406 = sbr.rel (%p404) target = $region44
        $region43: #{tpu_custom_call.1} parent=11 // pred_region
          _
        $region44: #{tpu_custom_call.1} parent=11 // pred_fallthru
          _
        // Predicated region
        $region45: #{tpu_custom_call.1} parent=11 // pred_check
          %p407 = pneg %p276
        $region46: #{tpu_custom_call.1} parent=11 // pred_check_branch
          %409 = sbr.rel (%p407) target = $region48
        $region47: #{tpu_custom_call.1} parent=11 // pred_region
          %s411 = ssub.s32 2048, 2048
          %412 = vsyncadd [#allocation18], %s411
          %s413 = sshll.u32 [#allocation17], 4
          %s414 = int_to_ptr.vmem [resolvable:$true] %s413
          %419 = dma.hbm_to_vmem [thread:$0]  %s12, 2048, %s414, [#allocation18], 128, 128, 8
        $region48: #{tpu_custom_call.1} parent=11 // pred_fallthru
          _
        // Predicated region
        $region49: #{tpu_custom_call.1} parent=11 // pred_check
          %p420 = pneg %p297
        $region50: #{tpu_custom_call.1} parent=11 // pred_check_branch
          %422 = sbr.rel (%p420) target = $region52
        $region51: #{tpu_custom_call.1} parent=11 // pred_region
          _
        $region52: #{tpu_custom_call.1} parent=11 // pred_fallthru
          _
      $region12: #{tpu_custom_call.1} parent=5 // pred_fallthru
        _
      %p423 = scmp.lt.s32.totalorder %s35, 3
      // Predicated region
      $region53: #{tpu_custom_call.1} parent=5 // pred_check
        %p424 = pneg %p423
      $region54: #{tpu_custom_call.1} parent=5 // pred_check_branch
        %426 = sbr.rel (%p424) target = $region56
      $region55: #{tpu_custom_call.1} parent=5 // pred_region
        // Predicated region
        $region57: #{tpu_custom_call.1} parent=55 // pred_check
          %p427 = pneg %p76
        $region58: #{tpu_custom_call.1} parent=55 // pred_check_branch
          %429 = sbr.rel (%p427) target = $region60
        $region59: #{tpu_custom_call.1} parent=55 // pred_region
          %p430 = scmp.lt.s32.totalorder %s35, 2
          %s431 = scalar_select %p430, %s35, 2
          %s432 = smul.addr %s431, 8
          %s433 = scalar_lea.vmem %s3, %s432
        $region60: #{tpu_custom_call.1} parent=55 // pred_fallthru
          _
        // Predicated region
        $region61: #{tpu_custom_call.1} parent=55 // pred_check
          %p434 = pneg %p102
        $region62: #{tpu_custom_call.1} parent=55 // pred_check_branch
          %436 = sbr.rel (%p434) target = $region64
        $region63: #{tpu_custom_call.1} parent=55 // pred_region
          %p437 = scmp.lt.s32.totalorder %s35, 2
          %s438 = scalar_select %p437, %s35, 2
          %s439 = smul.addr %s438, 8
          %s440 = scalar_lea.vmem %s4, %s439
        $region64: #{tpu_custom_call.1} parent=55 // pred_fallthru
          _
      $region56: #{tpu_custom_call.1} parent=5 // pred_fallthru
        _
      %p441 = scmp.le.s32.totalorder 1, %s35
      %p442 = scmp.lt.s32.totalorder %s35, 4
      %p443 = pnand %p441, %p442
      %p444 = pneg %p443
      // Predicated region
      $region65: #{tpu_custom_call.1} parent=5 // pred_check
        _
      $region66: #{tpu_custom_call.1} parent=5 // pred_check_branch
        %446 = sbr.rel (%p443) target = $region68
      $region67: #{tpu_custom_call.1} parent=5 // pred_region
        %s447 = ssub.s32 %s35, 1
        // Predicated region
        $region69: #{tpu_custom_call.1} parent=67 // pred_check
          %p448 = pneg %p56
        $region70: #{tpu_custom_call.1} parent=67 // pred_check_branch
          %450 = sbr.rel (%p448) target = $region72
        $region71: #{tpu_custom_call.1} parent=67 // pred_region
          %451 = dma.done [#allocation9], 256
        $region72: #{tpu_custom_call.1} parent=67 // pred_fallthru
          _
        // Predicated region
        $region73: #{tpu_custom_call.1} parent=67 // pred_check
          %p452 = pneg %p129
        $region74: #{tpu_custom_call.1} parent=67 // pred_check_branch
          %454 = sbr.rel (%p452) target = $region76
        $region75: #{tpu_custom_call.1} parent=67 // pred_region
          %455 = dma.done [#allocation12], 2048
        $region76: #{tpu_custom_call.1} parent=67 // pred_fallthru
          _
        // Predicated region
        $region77: #{tpu_custom_call.1} parent=67 // pred_check
          %p456 = pneg %p171
        $region78: #{tpu_custom_call.1} parent=67 // pred_check_branch
          %458 = sbr.rel (%p456) target = $region80
        $region79: #{tpu_custom_call.1} parent=67 // pred_region
          %459 = dma.done [#allocation12], 2048
        $region80: #{tpu_custom_call.1} parent=67 // pred_fallthru
          _
        // Predicated region
        $region81: #{tpu_custom_call.1} parent=67 // pred_check
          %p460 = pneg %p213
        $region82: #{tpu_custom_call.1} parent=67 // pred_check_branch
          %462 = sbr.rel (%p460) target = $region84
        $region83: #{tpu_custom_call.1} parent=67 // pred_region
          %463 = dma.done [#allocation15], 2048
        $region84: #{tpu_custom_call.1} parent=67 // pred_fallthru
          _
        // Predicated region
        $region85: #{tpu_custom_call.1} parent=67 // pred_check
          %p464 = pneg %p234
        $region86: #{tpu_custom_call.1} parent=67 // pred_check_branch
          %466 = sbr.rel (%p464) target = $region88
        $region87: #{tpu_custom_call.1} parent=67 // pred_region
          %467 = dma.done [#allocation15], 2048
        $region88: #{tpu_custom_call.1} parent=67 // pred_fallthru
          _
        // Predicated region
        $region89: #{tpu_custom_call.1} parent=67 // pred_check
          %p468 = pneg %p276
        $region90: #{tpu_custom_call.1} parent=67 // pred_check_branch
          %470 = sbr.rel (%p468) target = $region92
        $region91: #{tpu_custom_call.1} parent=67 // pred_region
          %471 = dma.done [#allocation18], 2048
        $region92: #{tpu_custom_call.1} parent=67 // pred_fallthru
          _
        %p472 = pneg %p56
        %p473 = pneg %p53
        %p474 = scmp.lt.s32.totalorder %s40, 2
        %s475 = scalar_select %p474, %s40, 2
        %s476 = smul.addr %s475, 8
        %s477 = scalar_lea.vmem %s3, %s476
        %p478 = pneg %p82
        %p479 = pneg %p79
        %p480 = scmp.lt.s32.totalorder %s40, 2
        %s481 = scalar_select %p480, %s40, 2
        %s482 = smul.addr %s481, 8
        %s483 = scalar_lea.vmem %s4, %s482
        %p484 = pneg %p108
        %p485 = pneg %p105
        %p486 = pneg %p129
        %p487 = pneg %p126
        %p488 = pneg %p150
        %p489 = pneg %p147
        %p490 = pneg %p171
        %p491 = pneg %p168
        %p492 = pneg %p192
        %p493 = pneg %p189
        %p494 = pneg %p213
        %p495 = pneg %p210
        %p496 = pneg %p234
        %p497 = pneg %p231
        %p498 = pneg %p255
        %p499 = pneg %p252
        %p500 = pneg %p276
        %p501 = pneg %p273
        %p502 = pneg %p297
        %p503 = pneg %p294
        %p504 = pneg %p318
        %p505 = pneg %p315
        %p506 = scmp.lt.s32.totalorder %s40, 2
        %s507 = scalar_select %p506, %s40, 2
        %s508 = smul.addr %s507, 8
        %s509 = scalar_lea.vmem %s3, %s508
        %p510 = scmp.lt.s32.totalorder %s40, 2
        %s511 = scalar_select %p510, %s40, 2
        %s512 = smul.addr %s511, 8
        %s513 = scalar_lea.vmem %s4, %s512
        %p514 = scmp.eq.s32.totalorder %s40, 0
        // Predicated region
        $region93: #{tpu_custom_call.1} parent=67 // pred_check
          %p515 = pneg %p514
        $region94: #{tpu_custom_call.1} parent=67 // pred_check_branch
          %517 = sbr.rel (%p515) target = $region96
        $region95: #{tpu_custom_call.1} parent=67 // pred_region
          %v518 = vld [vmem:[#allocation8] sm:$0xff]
          %v519 = vld [vmem:[#allocation8 + $0x8] sm:$0xff]
          %v520 = vld [vmem:[#allocation14] sm:$0xff]
          %v521 = vld [vmem:[#allocation14 + $0x8] sm:$0xff]
          %v522 = vld [vmem:[#allocation14 + $0x10] sm:$0xff]
          %v523 = vld [vmem:[#allocation14 + $0x18] sm:$0xff]
          %v524 = vld [vmem:[#allocation14 + $0x20] sm:$0xff]
          %v525 = vld [vmem:[#allocation14 + $0x28] sm:$0xff]
          %v526 = vld [vmem:[#allocation14 + $0x30] sm:$0xff]
          %v527 = vld [vmem:[#allocation14 + $0x38] sm:$0xff]
          %v528 = vld [vmem:[#allocation14 + $0x40] sm:$0xff]
          %v529 = vld [vmem:[#allocation14 + $0x48] sm:$0xff]
          %v530 = vld [vmem:[#allocation14 + $0x50] sm:$0xff]
          %v531 = vld [vmem:[#allocation14 + $0x58] sm:$0xff]
          %v532 = vld [vmem:[#allocation14 + $0x60] sm:$0xff]
          %v533 = vld [vmem:[#allocation14 + $0x68] sm:$0xff]
          %v534 = vld [vmem:[#allocation14 + $0x70] sm:$0xff]
          %v535 = vld [vmem:[#allocation14 + $0x78] sm:$0xff]
          %536 = vmatprep.subr.mxu0 0.0
          %537 = vmatpush1.msra.mxu0 %v535
          %538 = vmatprep.subr.mxu0 0.0
          %539 = vmatpush1.msra.mxu0 %v534
          %540 = vmatprep.subr.mxu0 0.0
          %541 = vmatpush1.msra.mxu0 %v533
          %542 = vmatprep.subr.mxu0 0.0
          %543 = vmatpush1.msra.mxu0 %v532
          %544 = vmatprep.subr.mxu0 0.0
          %545 = vmatpush1.msra.mxu0 %v531
          %546 = vmatprep.subr.mxu0 0.0
          %547 = vmatpush1.msra.mxu0 %v530
          %548 = vmatprep.subr.mxu0 0.0
          %549 = vmatpush1.msra.mxu0 %v529
          %550 = vmatprep.subr.mxu0 0.0
          %551 = vmatpush1.msra.mxu0 %v528
          %552 = vmatprep.subr.mxu0 0.0
          %553 = vmatpush1.msra.mxu0 %v527
          %554 = vmatprep.subr.mxu0 0.0
          %555 = vmatpush1.msra.mxu0 %v526
          %556 = vmatprep.subr.mxu0 0.0
          %557 = vmatpush1.msra.mxu0 %v525
          %558 = vmatprep.subr.mxu0 0.0
          %559 = vmatpush1.msra.mxu0 %v524
          %560 = vmatprep.subr.mxu0 0.0
          %561 = vmatpush1.msra.mxu0 %v523
          %562 = vmatprep.subr.mxu0 0.0
          %563 = vmatpush1.msra.mxu0 %v522
          %564 = vmatprep.subr.mxu0 0.0
          %565 = vmatpush1.msra.mxu0 %v521
          %566 = vmatprep.subr.mxu0 0.0
          %567 = vmatpush1.msra.mxu0 %v520
          %568 = vmatprep.subr.mxu0 0.0
          %569 = vmatpush2.msra.mxu0 0.0
          %570 = vmatprep.subr.mxu0 0.0
          %571 = vmatpush2.msra.mxu0 0.0
          %572 = vmatprep.subr.mxu0 0.0
          %573 = vmatpush2.msra.mxu0 0.0
          %574 = vmatprep.subr.mxu0 0.0
          %575 = vmatpush2.msra.mxu0 0.0
          %576 = vmatprep.subr.mxu0 0.0
          %577 = vmatpush2.msra.mxu0 0.0
          %578 = vmatprep.subr.mxu0 0.0
          %579 = vmatpush2.msra.mxu0 0.0
          %580 = vmatprep.subr.mxu0 0.0
          %581 = vmatpush2.msra.mxu0 0.0
          %582 = vmatprep.subr.mxu0 0.0
          %583 = vmatpush2.msra.mxu0 0.0
          %584 = vmatprep.subr.mxu0 0.0
          %585 = vmatpush2.msra.mxu0 0.0
          %586 = vmatprep.subr.mxu0 0.0
          %587 = vmatpush2.msra.mxu0 0.0
          %588 = vmatprep.subr.mxu0 0.0
          %589 = vmatpush2.msra.mxu0 0.0
          %590 = vmatprep.subr.mxu0 0.0
          %591 = vmatpush2.msra.mxu0 0.0
          %592 = vmatprep.subr.mxu0 0.0
          %593 = vmatpush2.msra.mxu0 0.0
          %594 = vmatprep.subr.mxu0 0.0
          %595 = vmatpush2.msra.mxu0 0.0
          %596 = vmatprep.subr.mxu0 0.0
          %597 = vmatpush2.msra.mxu0 0.0
          %598 = vmatprep.subr.mxu0 0.0
          %599 = vmatpush2.msra.mxu0 0.0
          %600 = vmatprep.mubr.f32.mxu0 0.0
          %601 = vmatmul.mubr.f32.gmra.mxu0 %v518
          %v602 = vpop.f32.mrf.mxu0
          %v603 = vadd.f32 0.0, %v602
          %v604 = vpop.f32.mrf.mxu0
          %605 = vmatprep.mubr.f32.mxu0 0.0
          %606 = vmatmul.mubr.f32.gmra.mxu0 %v519
          %v607 = vpop.f32.mrf.mxu0
          %v608 = vadd.f32 0.0, %v607
          %v609 = vpop.f32.mrf.mxu0
          %610 = vdwg.mxu0
          %611 = vst [vmem:[#allocation2] sm:$0xff] %v603
          %612 = vst [vmem:[#allocation2 + $0x8] sm:$0xff] %v608
          %613 = vst [vmem:[#allocation3] sm:$0xff] 0.0
          %614 = vst [vmem:[#allocation3 + $0x8] sm:$0xff] 0.0
        $region96: #{tpu_custom_call.1} parent=67 // pred_fallthru
          _
        %v615 = vld [vmem:[%s513] sm:$0xff]
        %v616 = vld [vmem:[#allocation11] sm:$0xff]
        %v617 = vld [vmem:[#allocation11 + $0x8] sm:$0xff]
        %v618 = vld [vmem:[#allocation11 + $0x10] sm:$0xff]
        %v619 = vld [vmem:[#allocation11 + $0x18] sm:$0xff]
        %v620 = vld [vmem:[#allocation11 + $0x20] sm:$0xff]
        %v621 = vld [vmem:[#allocation11 + $0x28] sm:$0xff]
        %v622 = vld [vmem:[#allocation11 + $0x30] sm:$0xff]
        %v623 = vld [vmem:[#allocation11 + $0x38] sm:$0xff]
        %v624 = vld [vmem:[#allocation11 + $0x40] sm:$0xff]
        %v625 = vld [vmem:[#allocation11 + $0x48] sm:$0xff]
        %v626 = vld [vmem:[#allocation11 + $0x50] sm:$0xff]
        %v627 = vld [vmem:[#allocation11 + $0x58] sm:$0xff]
        %v628 = vld [vmem:[#allocation11 + $0x60] sm:$0xff]
        %v629 = vld [vmem:[#allocation11 + $0x68] sm:$0xff]
        %v630 = vld [vmem:[#allocation11 + $0x70] sm:$0xff]
        %v631 = vld [vmem:[#allocation11 + $0x78] sm:$0xff]
        %v632 = vld [vmem:[%s6] sm:$0x1]
        %v634 = vlaneseq
        %v635 = vshrl.u32 %v634, 7
        %v636 = vsub.s32 0, %v635
        %v637 = vrot.slane %v632, %v636
        %639 = vmatprep.subr.mxu0 0.0
        %640 = vmatpush1.msra.mxu0 %v631
        %641 = vmatprep.subr.mxu0 0.0
        %642 = vmatpush1.msra.mxu0 %v630
        %643 = vmatprep.subr.mxu0 0.0
        %644 = vmatpush1.msra.mxu0 %v629
        %645 = vmatprep.subr.mxu0 0.0
        %646 = vmatpush1.msra.mxu0 %v628
        %647 = vmatprep.subr.mxu0 0.0
        %648 = vmatpush1.msra.mxu0 %v627
        %649 = vmatprep.subr.mxu0 0.0
        %650 = vmatpush1.msra.mxu0 %v626
        %651 = vmatprep.subr.mxu0 0.0
        %652 = vmatpush1.msra.mxu0 %v625
        %653 = vmatprep.subr.mxu0 0.0
        %654 = vmatpush1.msra.mxu0 %v624
        %655 = vmatprep.subr.mxu0 0.0
        %656 = vmatpush1.msra.mxu0 %v623
        %657 = vmatprep.subr.mxu0 0.0
        %658 = vmatpush1.msra.mxu0 %v622
        %659 = vmatprep.subr.mxu0 0.0
        %660 = vmatpush1.msra.mxu0 %v621
        %661 = vmatprep.subr.mxu0 0.0
        %662 = vmatpush1.msra.mxu0 %v620
        %663 = vmatprep.subr.mxu0 0.0
        %664 = vmatpush1.msra.mxu0 %v619
        %665 = vmatprep.subr.mxu0 0.0
        %666 = vmatpush1.msra.mxu0 %v618
        %667 = vmatprep.subr.mxu0 0.0
        %668 = vmatpush1.msra.mxu0 %v617
        %669 = vmatprep.subr.mxu0 0.0
        %670 = vmatpush1.msra.mxu0 %v616
        %671 = vmatprep.subr.mxu0 0.0
        %672 = vmatpush2.msra.mxu0 0.0
        %673 = vmatprep.subr.mxu0 0.0
        %674 = vmatpush2.msra.mxu0 0.0
        %675 = vmatprep.subr.mxu0 0.0
        %676 = vmatpush2.msra.mxu0 0.0
        %677 = vmatprep.subr.mxu0 0.0
        %678 = vmatpush2.msra.mxu0 0.0
        %679 = vmatprep.subr.mxu0 0.0
        %680 = vmatpush2.msra.mxu0 0.0
        %681 = vmatprep.subr.mxu0 0.0
        %682 = vmatpush2.msra.mxu0 0.0
        %683 = vmatprep.subr.mxu0 0.0
        %684 = vmatpush2.msra.mxu0 0.0
        %685 = vmatprep.subr.mxu0 0.0
        %686 = vmatpush2.msra.mxu0 0.0
        %687 = vmatprep.subr.mxu0 0.0
        %688 = vmatpush2.msra.mxu0 0.0
        %689 = vmatprep.subr.mxu0 0.0
        %690 = vmatpush2.msra.mxu0 0.0
        %691 = vmatprep.subr.mxu0 0.0
        %692 = vmatpush2.msra.mxu0 0.0
        %693 = vmatprep.subr.mxu0 0.0
        %694 = vmatpush2.msra.mxu0 0.0
        %695 = vmatprep.subr.mxu0 0.0
        %696 = vmatpush2.msra.mxu0 0.0
        %697 = vmatprep.subr.mxu0 0.0
        %698 = vmatpush2.msra.mxu0 0.0
        %699 = vmatprep.subr.mxu0 0.0
        %700 = vmatpush2.msra.mxu0 0.0
        %701 = vmatprep.subr.mxu0 0.0
        %702 = vmatpush2.msra.mxu0 0.0
        %703 = vmatprep.mubr.f32.mxu0 0.0
        %704 = vmatmul.mubr.f32.gmra.mxu0 %v615
        %v705 = vpop.f32.mrf.mxu0
        %v706 = vadd.f32 %v637, %v705
        %v707 = vpop.f32.mrf.mxu0
        %708 = vdwg.mxu0
        %v709 = vmax.f32 %v706, 0.0
        %vm710 = vcmp.ne.f32.partialorder %v706, %v706
        %v711 = vadd.f32 %v706, 0.0
        %v712 = vand.u32 2147483647, %v706
        %v713 = vsub.f32 0.0, %v712
        %v714 = vmul.f32 %v713, 1.442695
        %v715 = vpow.pop %v714
        %v716 = vadd.f32 %v715, 1.0
        %v717 = vlog2.pop %v716
        %v718 = vmul.f32 %v717, 0.6931472
        %v719 = vmul.f32 -0.5, %v715
        %v720 = vadd.f32 %v719, 1.0
        %v721 = vmul.f32 %v720, %v715
        %v722 = vand.u32 2147483647, %v715
        %vm723 = vcmp.lt.f32.partialorder %v722, 0.0004427343
        %v724 = vsel %vm723, %v721, %v718
        %v725 = vadd.f32 %v709, %v724
        %v726 = vsel %vm710, %v711, %v725
        %v727 = vsub.f32 %v726, 0.6931472
        %v728 = vld [vmem:[#allocation13] sm:$0xff]
        %v729 = vld [vmem:[#allocation13 + $0x8] sm:$0xff]
        %v730 = vld [vmem:[#allocation13 + $0x10] sm:$0xff]
        %v731 = vld [vmem:[#allocation13 + $0x18] sm:$0xff]
        %v732 = vld [vmem:[#allocation13 + $0x20] sm:$0xff]
        %v733 = vld [vmem:[#allocation13 + $0x28] sm:$0xff]
        %v734 = vld [vmem:[#allocation13 + $0x30] sm:$0xff]
        %v735 = vld [vmem:[#allocation13 + $0x38] sm:$0xff]
        %v736 = vld [vmem:[#allocation13 + $0x40] sm:$0xff]
        %v737 = vld [vmem:[#allocation13 + $0x48] sm:$0xff]
        %v738 = vld [vmem:[#allocation13 + $0x50] sm:$0xff]
        %v739 = vld [vmem:[#allocation13 + $0x58] sm:$0xff]
        %v740 = vld [vmem:[#allocation13 + $0x60] sm:$0xff]
        %v741 = vld [vmem:[#allocation13 + $0x68] sm:$0xff]
        %v742 = vld [vmem:[#allocation13 + $0x70] sm:$0xff]
        %v743 = vld [vmem:[#allocation13 + $0x78] sm:$0xff]
        %v744 = vld [vmem:[%s8] sm:$0x1]
        %v746 = vlaneseq
        %v747 = vshrl.u32 %v746, 7
        %v748 = vsub.s32 0, %v747
        %v749 = vrot.slane %v744, %v748
        %751 = vmatprep.subr.mxu0 0.0
        %752 = vmatpush1.msra.mxu0 %v743
        %753 = vmatprep.subr.mxu0 0.0
        %754 = vmatpush1.msra.mxu0 %v742
        %755 = vmatprep.subr.mxu0 0.0
        %756 = vmatpush1.msra.mxu0 %v741
        %757 = vmatprep.subr.mxu0 0.0
        %758 = vmatpush1.msra.mxu0 %v740
        %759 = vmatprep.subr.mxu0 0.0
        %760 = vmatpush1.msra.mxu0 %v739
        %761 = vmatprep.subr.mxu0 0.0
        %762 = vmatpush1.msra.mxu0 %v738
        %763 = vmatprep.subr.mxu0 0.0
        %764 = vmatpush1.msra.mxu0 %v737
        %765 = vmatprep.subr.mxu0 0.0
        %766 = vmatpush1.msra.mxu0 %v736
        %767 = vmatprep.subr.mxu0 0.0
        %768 = vmatpush1.msra.mxu0 %v735
        %769 = vmatprep.subr.mxu0 0.0
        %770 = vmatpush1.msra.mxu0 %v734
        %771 = vmatprep.subr.mxu0 0.0
        %772 = vmatpush1.msra.mxu0 %v733
        %773 = vmatprep.subr.mxu0 0.0
        %774 = vmatpush1.msra.mxu0 %v732
        %775 = vmatprep.subr.mxu0 0.0
        %776 = vmatpush1.msra.mxu0 %v731
        %777 = vmatprep.subr.mxu0 0.0
        %778 = vmatpush1.msra.mxu0 %v730
        %779 = vmatprep.subr.mxu0 0.0
        %780 = vmatpush1.msra.mxu0 %v729
        %781 = vmatprep.subr.mxu0 0.0
        %782 = vmatpush1.msra.mxu0 %v728
        %783 = vmatprep.subr.mxu0 0.0
        %784 = vmatpush2.msra.mxu0 0.0
        %785 = vmatprep.subr.mxu0 0.0
        %786 = vmatpush2.msra.mxu0 0.0
        %787 = vmatprep.subr.mxu0 0.0
        %788 = vmatpush2.msra.mxu0 0.0
        %789 = vmatprep.subr.mxu0 0.0
        %790 = vmatpush2.msra.mxu0 0.0
        %791 = vmatprep.subr.mxu0 0.0
        %792 = vmatpush2.msra.mxu0 0.0
        %793 = vmatprep.subr.mxu0 0.0
        %794 = vmatpush2.msra.mxu0 0.0
        %795 = vmatprep.subr.mxu0 0.0
        %796 = vmatpush2.msra.mxu0 0.0
        %797 = vmatprep.subr.mxu0 0.0
        %798 = vmatpush2.msra.mxu0 0.0
        %799 = vmatprep.subr.mxu0 0.0
        %800 = vmatpush2.msra.mxu0 0.0
        %801 = vmatprep.subr.mxu0 0.0
        %802 = vmatpush2.msra.mxu0 0.0
        %803 = vmatprep.subr.mxu0 0.0
        %804 = vmatpush2.msra.mxu0 0.0
        %805 = vmatprep.subr.mxu0 0.0
        %806 = vmatpush2.msra.mxu0 0.0
        %807 = vmatprep.subr.mxu0 0.0
        %808 = vmatpush2.msra.mxu0 0.0
        %809 = vmatprep.subr.mxu0 0.0
        %810 = vmatpush2.msra.mxu0 0.0
        %811 = vmatprep.subr.mxu0 0.0
        %812 = vmatpush2.msra.mxu0 0.0
        %813 = vmatprep.subr.mxu0 0.0
        %814 = vmatpush2.msra.mxu0 0.0
        %815 = vmatprep.mubr.f32.mxu0 0.0
        %816 = vmatmul.mubr.f32.gmra.mxu0 %v727
        %v817 = vpop.f32.mrf.mxu0
        %v818 = vadd.f32 %v749, %v817
        %v819 = vpop.f32.mrf.mxu0
        %820 = vdwg.mxu0
        %v821 = vld [vmem:[%s509] sm:$0xff]
        %vm822 = vcmp.le.f32.partialorder %v821, 10.0
        %v823 = vsel %vm822, 1, 0
        %v824 = vcvt.s32.f32 %v823
        %826 = vset.pattern.permute.xlu0 0
        %827 = vperm.xlu0 %826, %v824
        %v828 = vpop.permute.xlu0 %827
        %v830 = vmul.f32 %v818, %v828
        %831 = vst [vmem:[#allocation4] sm:$0xff] %v830
        %s832 = smul.u32 %s40, 8
        %s833 = sld [smem:[#allocation6 + %s832]]
        %s834 = sld [smem:[#allocation7 + %s832]]
        %s835 = scalar_lea.vmem [#allocation2], %s833
        %v836 = vld [vmem:[%s835] sm:$0x1]
        %v837 = vld [vmem:[#allocation4] sm:$0x1]
        %v838 = vmul.f32 %v836, %v837
        %s839 = scalar_lea.vmem [#allocation3], %s834
        %v840 = vld [vmem:[%s839] sm:$0x1]
        %v841 = vadd.f32 %v840, %v838
        %842 = vst [vmem:[%s839] sm:$0x1] %v841
        %s843 = sadd.s32 %s832, 1
        %s844 = sld [smem:[#allocation6 + %s843]]
        %s845 = sld [smem:[#allocation7 + %s843]]
        %s846 = scalar_lea.vmem [#allocation2], %s844
        %v847 = vld [vmem:[%s846] sm:$0x1]
        %v848 = vld [vmem:[#allocation4 + $0x1] sm:$0x1]
        %v849 = vmul.f32 %v847, %v848
        %s850 = scalar_lea.vmem [#allocation3], %s845
        %v851 = vld [vmem:[%s850] sm:$0x1]
        %v852 = vadd.f32 %v851, %v849
        %853 = vst [vmem:[%s850] sm:$0x1] %v852
        %s854 = sadd.s32 %s832, 2
        %s855 = sld [smem:[#allocation6 + %s854]]
        %s856 = sld [smem:[#allocation7 + %s854]]
        %s857 = scalar_lea.vmem [#allocation2], %s855
        %v858 = vld [vmem:[%s857] sm:$0x1]
        %v859 = vld [vmem:[#allocation4 + $0x2] sm:$0x1]
        %v860 = vmul.f32 %v858, %v859
        %s861 = scalar_lea.vmem [#allocation3], %s856
        %v862 = vld [vmem:[%s861] sm:$0x1]
        %v863 = vadd.f32 %v862, %v860
        %864 = vst [vmem:[%s861] sm:$0x1] %v863
        %s865 = sadd.s32 %s832, 3
        %s866 = sld [smem:[#allocation6 + %s865]]
        %s867 = sld [smem:[#allocation7 + %s865]]
        %s868 = scalar_lea.vmem [#allocation2], %s866
        %v869 = vld [vmem:[%s868] sm:$0x1]
        %v870 = vld [vmem:[#allocation4 + $0x3] sm:$0x1]
        %v871 = vmul.f32 %v869, %v870
        %s872 = scalar_lea.vmem [#allocation3], %s867
        %v873 = vld [vmem:[%s872] sm:$0x1]
        %v874 = vadd.f32 %v873, %v871
        %875 = vst [vmem:[%s872] sm:$0x1] %v874
        %s876 = sadd.s32 %s832, 4
        %s877 = sld [smem:[#allocation6 + %s876]]
        %s878 = sld [smem:[#allocation7 + %s876]]
        %s879 = scalar_lea.vmem [#allocation2], %s877
        %v880 = vld [vmem:[%s879] sm:$0x1]
        %v881 = vld [vmem:[#allocation4 + $0x4] sm:$0x1]
        %v882 = vmul.f32 %v880, %v881
        %s883 = scalar_lea.vmem [#allocation3], %s878
        %v884 = vld [vmem:[%s883] sm:$0x1]
        %v885 = vadd.f32 %v884, %v882
        %886 = vst [vmem:[%s883] sm:$0x1] %v885
        %s887 = sadd.s32 %s832, 5
        %s888 = sld [smem:[#allocation6 + %s887]]
        %s889 = sld [smem:[#allocation7 + %s887]]
        %s890 = scalar_lea.vmem [#allocation2], %s888
        %v891 = vld [vmem:[%s890] sm:$0x1]
        %v892 = vld [vmem:[#allocation4 + $0x5] sm:$0x1]
        %v893 = vmul.f32 %v891, %v892
        %s894 = scalar_lea.vmem [#allocation3], %s889
        %v895 = vld [vmem:[%s894] sm:$0x1]
        %v896 = vadd.f32 %v895, %v893
        %897 = vst [vmem:[%s894] sm:$0x1] %v896
        %s898 = sadd.s32 %s832, 6
        %s899 = sld [smem:[#allocation6 + %s898]]
        %s900 = sld [smem:[#allocation7 + %s898]]
        %s901 = scalar_lea.vmem [#allocation2], %s899
        %v902 = vld [vmem:[%s901] sm:$0x1]
        %v903 = vld [vmem:[#allocation4 + $0x6] sm:$0x1]
        %v904 = vmul.f32 %v902, %v903
        %s905 = scalar_lea.vmem [#allocation3], %s900
        %v906 = vld [vmem:[%s905] sm:$0x1]
        %v907 = vadd.f32 %v906, %v904
        %908 = vst [vmem:[%s905] sm:$0x1] %v907
        %s909 = sadd.s32 %s832, 7
        %s910 = sld [smem:[#allocation6 + %s909]]
        %s911 = sld [smem:[#allocation7 + %s909]]
        %s912 = scalar_lea.vmem [#allocation2], %s910
        %v913 = vld [vmem:[%s912] sm:$0x1]
        %v914 = vld [vmem:[#allocation4 + $0x7] sm:$0x1]
        %v915 = vmul.f32 %v913, %v914
        %s916 = scalar_lea.vmem [#allocation3], %s911
        %v917 = vld [vmem:[%s916] sm:$0x1]
        %v918 = vadd.f32 %v917, %v915
        %919 = vst [vmem:[%s916] sm:$0x1] %v918
        %p920 = scmp.eq.s32.totalorder %s40, 2
        // Predicated region
        $region97: #{tpu_custom_call.1} parent=67 // pred_check
          %p921 = pneg %p920
        $region98: #{tpu_custom_call.1} parent=67 // pred_check_branch
          %923 = sbr.rel (%p921) target = $region100
        $region99: #{tpu_custom_call.1} parent=67 // pred_region
          %v924 = vld [vmem:[#allocation3] sm:$0xff]
          %v925 = vld [vmem:[#allocation3 + $0x8] sm:$0xff]
          %v926 = vld [vmem:[#allocation16] sm:$0xff]
          %v927 = vld [vmem:[#allocation16 + $0x8] sm:$0xff]
          %v928 = vld [vmem:[#allocation16 + $0x10] sm:$0xff]
          %v929 = vld [vmem:[#allocation16 + $0x18] sm:$0xff]
          %v930 = vld [vmem:[#allocation16 + $0x20] sm:$0xff]
          %v931 = vld [vmem:[#allocation16 + $0x28] sm:$0xff]
          %v932 = vld [vmem:[#allocation16 + $0x30] sm:$0xff]
          %v933 = vld [vmem:[#allocation16 + $0x38] sm:$0xff]
          %v934 = vld [vmem:[#allocation16 + $0x40] sm:$0xff]
          %v935 = vld [vmem:[#allocation16 + $0x48] sm:$0xff]
          %v936 = vld [vmem:[#allocation16 + $0x50] sm:$0xff]
          %v937 = vld [vmem:[#allocation16 + $0x58] sm:$0xff]
          %v938 = vld [vmem:[#allocation16 + $0x60] sm:$0xff]
          %v939 = vld [vmem:[#allocation16 + $0x68] sm:$0xff]
          %v940 = vld [vmem:[#allocation16 + $0x70] sm:$0xff]
          %v941 = vld [vmem:[#allocation16 + $0x78] sm:$0xff]
          %v942 = vld [vmem:[%s11] sm:$0x1]
          %v944 = vlaneseq
          %v945 = vshrl.u32 %v944, 7
          %v946 = vsub.s32 0, %v945
          %v947 = vrot.slane %v942, %v946
          %949 = vmatprep.subr.mxu0 0.0
          %950 = vmatpush1.msra.mxu0 %v941
          %951 = vmatprep.subr.mxu0 0.0
          %952 = vmatpush1.msra.mxu0 %v940
          %953 = vmatprep.subr.mxu0 0.0
          %954 = vmatpush1.msra.mxu0 %v939
          %955 = vmatprep.subr.mxu0 0.0
          %956 = vmatpush1.msra.mxu0 %v938
          %957 = vmatprep.subr.mxu0 0.0
          %958 = vmatpush1.msra.mxu0 %v937
          %959 = vmatprep.subr.mxu0 0.0
          %960 = vmatpush1.msra.mxu0 %v936
          %961 = vmatprep.subr.mxu0 0.0
          %962 = vmatpush1.msra.mxu0 %v935
          %963 = vmatprep.subr.mxu0 0.0
          %964 = vmatpush1.msra.mxu0 %v934
          %965 = vmatprep.subr.mxu0 0.0
          %966 = vmatpush1.msra.mxu0 %v933
          %967 = vmatprep.subr.mxu0 0.0
          %968 = vmatpush1.msra.mxu0 %v932
          %969 = vmatprep.subr.mxu0 0.0
          %970 = vmatpush1.msra.mxu0 %v931
          %971 = vmatprep.subr.mxu0 0.0
          %972 = vmatpush1.msra.mxu0 %v930
          %973 = vmatprep.subr.mxu0 0.0
          %974 = vmatpush1.msra.mxu0 %v929
          %975 = vmatprep.subr.mxu0 0.0
          %976 = vmatpush1.msra.mxu0 %v928
          %977 = vmatprep.subr.mxu0 0.0
          %978 = vmatpush1.msra.mxu0 %v927
          %979 = vmatprep.subr.mxu0 0.0
          %980 = vmatpush1.msra.mxu0 %v926
          %981 = vmatprep.subr.mxu0 0.0
          %982 = vmatpush2.msra.mxu0 0.0
          %983 = vmatprep.subr.mxu0 0.0
          %984 = vmatpush2.msra.mxu0 0.0
          %985 = vmatprep.subr.mxu0 0.0
          %986 = vmatpush2.msra.mxu0 0.0
          %987 = vmatprep.subr.mxu0 0.0
          %988 = vmatpush2.msra.mxu0 0.0
          %989 = vmatprep.subr.mxu0 0.0
          %990 = vmatpush2.msra.mxu0 0.0
          %991 = vmatprep.subr.mxu0 0.0
          %992 = vmatpush2.msra.mxu0 0.0
          %993 = vmatprep.subr.mxu0 0.0
          %994 = vmatpush2.msra.mxu0 0.0
          %995 = vmatprep.subr.mxu0 0.0
          %996 = vmatpush2.msra.mxu0 0.0
          %997 = vmatprep.subr.mxu0 0.0
          %998 = vmatpush2.msra.mxu0 0.0
          %999 = vmatprep.subr.mxu0 0.0
          %1000 = vmatpush2.msra.mxu0 0.0
          %1001 = vmatprep.subr.mxu0 0.0
          %1002 = vmatpush2.msra.mxu0 0.0
          %1003 = vmatprep.subr.mxu0 0.0
          %1004 = vmatpush2.msra.mxu0 0.0
          %1005 = vmatprep.subr.mxu0 0.0
          %1006 = vmatpush2.msra.mxu0 0.0
          %1007 = vmatprep.subr.mxu0 0.0
          %1008 = vmatpush2.msra.mxu0 0.0
          %1009 = vmatprep.subr.mxu0 0.0
          %1010 = vmatpush2.msra.mxu0 0.0
          %1011 = vmatprep.subr.mxu0 0.0
          %1012 = vmatpush2.msra.mxu0 0.0
          %1013 = vmatprep.mubr.f32.mxu0 0.0
          %1014 = vmatmul.mubr.f32.gmra.mxu0 %v924
          %v1015 = vpop.f32.mrf.mxu0
          %v1016 = vadd.f32 %v947, %v1015
          %v1017 = vpop.f32.mrf.mxu0
          %1018 = vmatprep.mubr.f32.mxu0 0.0
          %1019 = vmatmul.mubr.f32.gmra.mxu0 %v925
          %v1020 = vpop.f32.mrf.mxu0
          %v1021 = vadd.f32 %v947, %v1020
          %v1022 = vpop.f32.mrf.mxu0
          %1023 = vdwg.mxu0
          %v1024 = vmax.f32 %v1016, 0.0
          %v1025 = vmax.f32 %v1021, 0.0
          %vm1026 = vcmp.ne.f32.partialorder %v1016, %v1016
          %vm1027 = vcmp.ne.f32.partialorder %v1021, %v1021
          %v1028 = vadd.f32 %v1016, 0.0
          %v1029 = vadd.f32 %v1021, 0.0
          %v1030 = vand.u32 2147483647, %v1016
          %v1031 = vand.u32 2147483647, %v1021
          %v1032 = vsub.f32 0.0, %v1030
          %v1033 = vsub.f32 0.0, %v1031
          %v1034 = vmul.f32 %v1032, 1.442695
          %v1035 = vpow.pop %v1034
          %v1036 = vmul.f32 %v1033, 1.442695
          %v1037 = vpow.pop %v1036
          %v1038 = vadd.f32 %v1035, 1.0
          %v1039 = vlog2.pop %v1038
          %v1040 = vmul.f32 %v1039, 0.6931472
          %v1041 = vmul.f32 -0.5, %v1035
          %v1042 = vadd.f32 %v1041, 1.0
          %v1043 = vmul.f32 %v1042, %v1035
          %v1044 = vand.u32 2147483647, %v1035
          %vm1045 = vcmp.lt.f32.partialorder %v1044, 0.0004427343
          %v1046 = vsel %vm1045, %v1043, %v1040
          %v1047 = vadd.f32 %v1037, 1.0
          %v1048 = vlog2.pop %v1047
          %v1049 = vmul.f32 %v1048, 0.6931472
          %v1050 = vmul.f32 -0.5, %v1037
          %v1051 = vadd.f32 %v1050, 1.0
          %v1052 = vmul.f32 %v1051, %v1037
          %v1053 = vand.u32 2147483647, %v1037
          %vm1054 = vcmp.lt.f32.partialorder %v1053, 0.0004427343
          %v1055 = vsel %vm1054, %v1052, %v1049
          %v1056 = vadd.f32 %v1024, %v1046
          %v1057 = vadd.f32 %v1025, %v1055
          %v1058 = vsel %vm1026, %v1028, %v1056
          %v1059 = vsel %vm1027, %v1029, %v1057
          %v1060 = vsub.f32 %v1058, 0.6931472
          %v1061 = vsub.f32 %v1059, 0.6931472
          %v1062 = vld [vmem:[#allocation17] sm:$0xff]
          %v1063 = vld [vmem:[#allocation17 + $0x8] sm:$0xff]
          %v1064 = vld [vmem:[#allocation17 + $0x10] sm:$0xff]
          %v1065 = vld [vmem:[#allocation17 + $0x18] sm:$0xff]
          %v1066 = vld [vmem:[#allocation17 + $0x20] sm:$0xff]
          %v1067 = vld [vmem:[#allocation17 + $0x28] sm:$0xff]
          %v1068 = vld [vmem:[#allocation17 + $0x30] sm:$0xff]
          %v1069 = vld [vmem:[#allocation17 + $0x38] sm:$0xff]
          %v1070 = vld [vmem:[#allocation17 + $0x40] sm:$0xff]
          %v1071 = vld [vmem:[#allocation17 + $0x48] sm:$0xff]
          %v1072 = vld [vmem:[#allocation17 + $0x50] sm:$0xff]
          %v1073 = vld [vmem:[#allocation17 + $0x58] sm:$0xff]
          %v1074 = vld [vmem:[#allocation17 + $0x60] sm:$0xff]
          %v1075 = vld [vmem:[#allocation17 + $0x68] sm:$0xff]
          %v1076 = vld [vmem:[#allocation17 + $0x70] sm:$0xff]
          %v1077 = vld [vmem:[#allocation17 + $0x78] sm:$0xff]
          %v1078 = vld [vmem:[%s13] sm:$0x1]
          %v1080 = vlaneseq
          %v1081 = vshrl.u32 %v1080, 7
          %v1082 = vsub.s32 0, %v1081
          %v1083 = vrot.slane %v1078, %v1082
          %1085 = vmatprep.subr.mxu0 0.0
          %1086 = vmatpush1.msra.mxu0 %v1077
          %1087 = vmatprep.subr.mxu0 0.0
          %1088 = vmatpush1.msra.mxu0 %v1076
          %1089 = vmatprep.subr.mxu0 0.0
          %1090 = vmatpush1.msra.mxu0 %v1075
          %1091 = vmatprep.subr.mxu0 0.0
          %1092 = vmatpush1.msra.mxu0 %v1074
          %1093 = vmatprep.subr.mxu0 0.0
          %1094 = vmatpush1.msra.mxu0 %v1073
          %1095 = vmatprep.subr.mxu0 0.0
          %1096 = vmatpush1.msra.mxu0 %v1072
          %1097 = vmatprep.subr.mxu0 0.0
          %1098 = vmatpush1.msra.mxu0 %v1071
          %1099 = vmatprep.subr.mxu0 0.0
          %1100 = vmatpush1.msra.mxu0 %v1070
          %1101 = vmatprep.subr.mxu0 0.0
          %1102 = vmatpush1.msra.mxu0 %v1069
          %1103 = vmatprep.subr.mxu0 0.0
          %1104 = vmatpush1.msra.mxu0 %v1068
          %1105 = vmatprep.subr.mxu0 0.0
          %1106 = vmatpush1.msra.mxu0 %v1067
          %1107 = vmatprep.subr.mxu0 0.0
          %1108 = vmatpush1.msra.mxu0 %v1066
          %1109 = vmatprep.subr.mxu0 0.0
          %1110 = vmatpush1.msra.mxu0 %v1065
          %1111 = vmatprep.subr.mxu0 0.0
          %1112 = vmatpush1.msra.mxu0 %v1064
          %1113 = vmatprep.subr.mxu0 0.0
          %1114 = vmatpush1.msra.mxu0 %v1063
          %1115 = vmatprep.subr.mxu0 0.0
          %1116 = vmatpush1.msra.mxu0 %v1062
          %1117 = vmatprep.subr.mxu0 0.0
          %1118 = vmatpush2.msra.mxu0 0.0
          %1119 = vmatprep.subr.mxu0 0.0
          %1120 = vmatpush2.msra.mxu0 0.0
          %1121 = vmatprep.subr.mxu0 0.0
          %1122 = vmatpush2.msra.mxu0 0.0
          %1123 = vmatprep.subr.mxu0 0.0
          %1124 = vmatpush2.msra.mxu0 0.0
          %1125 = vmatprep.subr.mxu0 0.0
          %1126 = vmatpush2.msra.mxu0 0.0
          %1127 = vmatprep.subr.mxu0 0.0
          %1128 = vmatpush2.msra.mxu0 0.0
          %1129 = vmatprep.subr.mxu0 0.0
          %1130 = vmatpush2.msra.mxu0 0.0
          %1131 = vmatprep.subr.mxu0 0.0
          %1132 = vmatpush2.msra.mxu0 0.0
          %1133 = vmatprep.subr.mxu0 0.0
          %1134 = vmatpush2.msra.mxu0 0.0
          %1135 = vmatprep.subr.mxu0 0.0
          %1136 = vmatpush2.msra.mxu0 0.0
          %1137 = vmatprep.subr.mxu0 0.0
          %1138 = vmatpush2.msra.mxu0 0.0
          %1139 = vmatprep.subr.mxu0 0.0
          %1140 = vmatpush2.msra.mxu0 0.0
          %1141 = vmatprep.subr.mxu0 0.0
          %1142 = vmatpush2.msra.mxu0 0.0
          %1143 = vmatprep.subr.mxu0 0.0
          %1144 = vmatpush2.msra.mxu0 0.0
          %1145 = vmatprep.subr.mxu0 0.0
          %1146 = vmatpush2.msra.mxu0 0.0
          %1147 = vmatprep.subr.mxu0 0.0
          %1148 = vmatpush2.msra.mxu0 0.0
          %1149 = vmatprep.mubr.f32.mxu0 0.0
          %1150 = vmatmul.mubr.f32.gmra.mxu0 %v1060
          %v1151 = vpop.f32.mrf.mxu0
          %v1152 = vadd.f32 %v1083, %v1151
          %v1153 = vpop.f32.mrf.mxu0
          %1154 = vmatprep.mubr.f32.mxu0 0.0
          %1155 = vmatmul.mubr.f32.gmra.mxu0 %v1061
          %v1156 = vpop.f32.mrf.mxu0
          %v1157 = vadd.f32 %v1083, %v1156
          %v1158 = vpop.f32.mrf.mxu0
          %1159 = vdwg.mxu0
          %1160 = vst [vmem:[#allocation19] sm:$0xff] %v1152
          %1161 = vst [vmem:[#allocation19 + $0x8] sm:$0xff] %v1157
        $region100: #{tpu_custom_call.1} parent=67 // pred_fallthru
          _
        // Predicated region
        $region101: #{tpu_custom_call.1} parent=67 // pred_check
          %p1162 = pneg %p315
        $region102: #{tpu_custom_call.1} parent=67 // pred_check_branch
          %1164 = sbr.rel (%p1162) target = $region104
        $region103: #{tpu_custom_call.1} parent=67 // pred_region
          %s1166 = ssub.s32 256, 256
          %1167 = vsyncadd [#allocation10], %s1166
          %s1168 = sshll.u32 [#allocation19], 4
          %s1169 = int_to_ptr.vmem [resolvable:$true] %s1168
          %1174 = dma.vmem_to_hbm [thread:$0]  %s1169, 256, %s14, [#allocation10], 128, 128, 8
        $region104: #{tpu_custom_call.1} parent=67 // pred_fallthru
          _
        // Predicated region
        $region105: #{tpu_custom_call.1} parent=67 // pred_check
          %p1175 = pneg %p315
        $region106: #{tpu_custom_call.1} parent=67 // pred_check_branch
          %1177 = sbr.rel (%p1175) target = $region108
        $region107: #{tpu_custom_call.1} parent=67 // pred_region
          %1178 = dma.done [#allocation10], 256
        $region108: #{tpu_custom_call.1} parent=67 // pred_fallthru
          _
      $region68: #{tpu_custom_call.1} parent=5 // pred_fallthru
        _
      %p1179 = scmp.le.s32.totalorder 2, %s35
      // Predicated region
      $region109: #{tpu_custom_call.1} parent=5 // pred_check
        %p1180 = pneg %p1179
      $region110: #{tpu_custom_call.1} parent=5 // pred_check_branch
        %1182 = sbr.rel (%p1180) target = $region112
      $region111: #{tpu_custom_call.1} parent=5 // pred_region
        %s1183 = ssub.s32 %s35, 2
      $region112: #{tpu_custom_call.1} parent=5 // pred_fallthru
        _
    $region6: #{tpu_custom_call.1} parent=1 // loop_footer
      %s39 = sadd.s32 1, %s35
    $region7: #{tpu_custom_call.1} parent=1 // loop_footer_branch
      %34 = sbr.rel target = $region3
    $region8: #{tpu_custom_call.1} parent=1 // loop_exit
      _
    %1184 = vsyncpa [#allocation9], 1
    %s1185 = scalar_lea.sflag [#allocation9], 1
    %1186 = vsyncpa %s1185, 1
    %1187 = vsyncpa [#allocation12], 1
    %1188 = vsyncpa [#allocation15], 1
    %1189 = vsyncpa [#allocation18], 1
    %1190 = vsyncpa [#allocation10], 1
    %s1191 = scalar_lea.sflag [#allocation10], 1
    %1192 = vsyncpa %s1191, 1

</llo_original>
